<compile_context>
chip_gen: v6e
topology: v6e:2x2x1
jax: 0.10.0
libtpu: 0.0.40
codegen_flags: <defaults>
</compile_context>

<pallas_src>
import functools

import jax
import jax.numpy as jnp
from jax.experimental import pallas as pl
from jax.experimental.pallas import tpu as pltpu

LABEL_DIM = 6
FEAT_DIM = 128      # small-shape stand-in for EfficientNet-B0's 1280-ch 'features.8'
STEM_CH = 32
BN_EPS = 1e-5       # torchvision efficientnet_b0 uses nn.BatchNorm2d default eps
LANE = 128
KTAPS = 9           # 3x3 conv taps


def _round_up(x, m):
    return (x + m - 1) // m * m


# --------------------------- Pallas kernels ---------------------------------

def _fused_stem_head_pool_kernel(p_ref, w0_ref, t0_ref, w1_ref, t1b_ref,
                                 o_ref, acc_ref,
                                 *, hw_valid, tile_hw, needs_mask):
    # One spatial tile of one batch element, layout (channels, spatial):
    #   y0 = SiLU(W0' . taps + t0)     stem 3x3 s2 conv as 9 VPU FMAs (no MXU)
    #   y1 = SiLU(W1' @ y0 + t1)       head 1x1 conv on the MXU
    #   acc += sum_spatial(y1) ; o = acc / HW at the last tile   (mean over H,W)
    s = pl.program_id(1)

    @pl.when(s == 0)
    def _():
        acc_ref[...] = jnp.zeros_like(acc_ref)

    C1 = w1_ref.shape[0]
    chunk = LANE
    n_chunks = tile_hw // chunk

    w0 = w0_ref[...]                       # (C0, 9)  f32, BN scale folded
    t0 = t0_ref[...]                       # (C0, 1)  f32, BN shift
    w1 = w1_ref[...]                       # (C1, C0) bf16, BN scale folded

    def body(c, acc):
        off = pl.multiple_of(c * chunk, chunk)
        pc = p_ref[:, pl.ds(off, chunk)].astype(jnp.float32)       # (9, chunk)
        # Stem conv: K=9 contraction stays on the VPU (9 broadcast FMAs).
        y0 = t0 + w0[:, 0:1] * pc[0:1, :]
        for k in range(1, KTAPS):
            y0 = y0 + w0[:, k:k + 1] * pc[k:k + 1, :]              # (C0, chunk)
        y0 = y0 * jax.nn.sigmoid(y0)                                # SiLU (f32)
        # Head 1x1 conv on the MXU (bf16 operands, f32 accumulate).
        y1 = jnp.dot(w1, y0.astype(jnp.bfloat16),
                     preferred_element_type=jnp.float32)            # (C1, chunk)
        y1 = y1 + t1b_ref[:, pl.ds(0, chunk)]                       # BN shift
        # NOTE: two f32 sigmoids per element land on the single EUP; if EUP
        # becomes the binding slot on v6e/v7x, compute the y0 sigmoid in bf16.
        y1 = y1 * jax.nn.sigmoid(y1)                                # SiLU (f32)
        if needs_mask:                      # zero spatial padding columns
            col = (jax.lax.broadcasted_iota(jnp.int32, (1, chunk), 1)
                   + (s * tile_hw + off))
            y1 = jnp.where(col < hw_valid, y1, 0.0)
        return acc + y1

    acc = jax.lax.fori_loop(0, n_chunks, body,
                            jnp.zeros((C1, chunk), jnp.float32),
                            unroll=True)
    acc_ref[...] += acc

    @pl.when(s == pl.num_programs(1) - 1)
    def _():
        o_ref[...] = (jnp.sum(acc_ref[...], axis=1, keepdims=True)
                      * (1.0 / hw_valid))


def fused_stem_head_pool(patches, w0, t0, w1, t1b, *, hw_valid, tile_hw):
    # patches: (B, 9, HW_pad) bf16 (lane-dense); w0 (C0,9) f32; t0 (C0,1) f32;
    # w1 (C1,C0) bf16; t1b (C1,LANE) f32 (pre-broadcast head BN shift).
    B, K, HWp = patches.shape
    C0 = w0.shape[0]
    C1 = w1.shape[0]
    n_tiles = HWp // tile_hw

    cost = pl.CostEstimate(
        flops=2 * B * HWp * (K * C0 + C0 * C1),
        transcendentals=B * HWp * (C0 + C1),
        bytes_accessed=(patches.size * patches.dtype.itemsize
                        + w0.size * 4 + t0.size * 4
                        + w1.size * 2 + t1b.size * 4
                        + 4 * B * C1),
    )

    out = pl.pallas_call(
        functools.partial(_fused_stem_head_pool_kernel,
                          hw_valid=hw_valid, tile_hw=tile_hw,
                          needs_mask=(hw_valid != HWp)),
        out_shape=jax.ShapeDtypeStruct((B, C1, 1), jnp.float32),
        grid=(B, n_tiles),
        in_specs=[
            pl.BlockSpec((None, K, tile_hw), lambda b, s: (b, 0, s)),
            pl.BlockSpec((C0, K), lambda b, s: (0, 0)),
            pl.BlockSpec((C0, 1), lambda b, s: (0, 0)),
            pl.BlockSpec((C1, C0), lambda b, s: (0, 0)),
            pl.BlockSpec((C1, LANE), lambda b, s: (0, 0)),
        ],
        out_specs=pl.BlockSpec((None, C1, 1), lambda b, s: (b, 0, 0)),
        scratch_shapes=[pltpu.VMEM((C1, LANE), jnp.float32)],
        compiler_params=pltpu.CompilerParams(
            dimension_semantics=("parallel", "arbitrary")),
        cost_estimate=cost,
    )(patches, w0, t0, w1, t1b)
    return out.reshape(B, C1)


def _rnn2_linear_kernel(x_ref, wih1_ref, whh1_ref, b1_ref,
                        wih2_ref, whh2_ref, b2_ref,
                        wlin_ref, blin_ref, o_ref,
                        buf1_ref, buf2_ref, *, seq_len):
    # torch.nn.RNN(batch_first=True) on a 2-D (batch, feat) input treats it as an
    # UNBATCHED sequence of length `batch`, so we recur over the batch axis.
    # Both layers' input projections are hoisted out of the recurrences as dense
    # matmuls; each recurrent step is a single (1,H)@(H,H) bf16 matmul + tanh.
    f32 = jnp.float32
    bf16 = jnp.bfloat16
    H = whh1_ref.shape[0]

    # layer-1 input projection (dense, all steps at once)
    buf1_ref[...] = (jnp.dot(x_ref[...].astype(bf16), wih1_ref[...],
                             preferred_element_type=f32) + b1_ref[...])

    h0 = jnp.zeros((1, H), bf16)
    whh1 = whh1_ref[...]                                   # (H, H) bf16

    def step1(t, h1):
        pre = buf1_ref[pl.ds(t, 1), :] + jnp.dot(h1, whh1,
                                                 preferred_element_type=f32)
        h1n = jnp.tanh(pre)
        buf1_ref[pl.ds(t, 1), :] = h1n                     # overwrite in place
        return h1n.astype(bf16)

    jax.lax.fori_loop(0, seq_len, step1, h0, unroll=(seq_len <= 8))

    # layer-2 input projection (dense over all layer-1 outputs)
    buf2_ref[...] = (jnp.dot(buf1_ref[...].astype(bf16), wih2_ref[...],
                             preferred_element_type=f32) + b2_ref[...])

    whh2 = whh2_ref[...]                                   # (H, H) bf16

    def step2(t, h2):
        pre = buf2_ref[pl.ds(t, 1), :] + jnp.dot(h2, whh2,
                                                 preferred_element_type=f32)
        h2n = jnp.tanh(pre)
        buf2_ref[pl.ds(t, 1), :] = h2n
        return h2n.astype(bf16)

    jax.lax.fori_loop(0, seq_len, step2, h0, unroll=(seq_len <= 8))

    # final Linear fused as one dense matmul over all steps (lane-padded to 128).
    o_ref[...] = (jnp.dot(buf2_ref[...].astype(bf16), wlin_ref[...],
                          preferred_element_type=f32)
                  + blin_ref[...]).astype(o_ref.dtype)


def rnn2_linear(x, wih1, whh1, b1, wih2, whh2, b2, wlin, blin):
    L, D = x.shape
    H = whh1.shape[0]
    Np = wlin.shape[1]          # lane-padded label dim
    return pl.pallas_call(
        functools.partial(_rnn2_linear_kernel, seq_len=L),
        out_shape=jax.ShapeDtypeStruct((L, Np), jnp.float32),
        grid=(1,),
        in_specs=[
            pl.BlockSpec((L, D), lambda i: (0, 0)),
            pl.BlockSpec((D, H), lambda i: (0, 0)),
            pl.BlockSpec((H, H), lambda i: (0, 0)),
            pl.BlockSpec((1, H), lambda i: (0, 0)),
            pl.BlockSpec((H, H), lambda i: (0, 0)),
            pl.BlockSpec((H, H), lambda i: (0, 0)),
            pl.BlockSpec((1, H), lambda i: (0, 0)),
            pl.BlockSpec((H, Np), lambda i: (0, 0)),
            pl.BlockSpec((1, Np), lambda i: (0, 0)),
        ],
        out_specs=pl.BlockSpec((L, Np), lambda i: (0, 0)),
        scratch_shapes=[pltpu.VMEM((L, H), jnp.float32),    # xproj1 -> h1 buffer
                        pltpu.VMEM((L, H), jnp.float32)],   # xproj2 -> h2 buffer
        compiler_params=pltpu.CompilerParams(
            dimension_semantics=("arbitrary",)),
    )(x, wih1, whh1, b1, wih2, whh2, b2, wlin, blin)


# ------------------------------ glue -----------------------------------------

def fold_bn(gamma, beta, mean, var, eps=BN_EPS):
    scale = gamma / jnp.sqrt(var + eps)
    shift = beta - mean * scale
    return scale, shift


def im2col_3x3_s2(img):
    # img: (B, H, W) single channel. 3x3 conv, stride 2, padding 1.
    # Returns lane-dense taps (B, 9, Ho*Wo) with k = kh*3 + kw.
    B, H, W = img.shape
    xp = jnp.pad(img, ((0, 0), (1, 1), (1, 1)))
    Ho = (H + 2 - 3) // 2 + 1
    Wo = (W + 2 - 3) // 2 + 1
    taps = [xp[:, kh:kh + 2 * Ho - 1:2, kw:kw + 2 * Wo - 1:2]
            for kh in range(3) for kw in range(3)]
    patches = jnp.stack(taps, axis=1)                # (B, 9, Ho, Wo)
    return patches.reshape(B, KTAPS, Ho * Wo), Ho, Wo


def effnet_ori_forward(x, params):
    # x: (B, T, F)  ==  PyTorch: x.unsqueeze(1).transpose(2,3) -> (B,1,F,T) NCHW
    B, T, F = x.shape
    img = jnp.transpose(x, (0, 2, 1))                # (B, F, T), single channel

    # features[0]: Conv2d(1->32, 3x3, s2, p1, no bias) + BN + SiLU
    patches, Ho, Wo = im2col_3x3_s2(img)             # (B, 9, Ho*Wo)
    HWo = Ho * Wo
    HWp0 = _round_up(HWo, LANE)
    tile_hw = min(512, HWp0)                         # DMA tile (multiple of 128)
    HWp = _round_up(HWo, tile_hw)
    if HWp != HWo:
        patches = jnp.pad(patches, ((0, 0), (0, 0), (0, HWp - HWo)))

    # Fold BN scales into the conv weights (zero-cost param transform).
    s0, t0 = fold_bn(params["stem_bn_gamma"], params["stem_bn_beta"],
                     params["stem_bn_mean"], params["stem_bn_var"])
    w0f = (params["stem_w"] * s0[:, None]).astype(jnp.float32)    # (32, 9)
    t0c = t0.reshape(STEM_CH, 1).astype(jnp.float32)

    # features[8]: Conv2d(->FEAT_DIM, 1x1, no bias) + BN + SiLU, then
    # torch.mean(x, dim=[2,3]) — all fused in one Pallas call.
    s8, t8 = fold_bn(params["head_bn_gamma"], params["head_bn_beta"],
                     params["head_bn_mean"], params["head_bn_var"])
    w1f = (params["head_w"] * s8[:, None]).astype(jnp.bfloat16)   # (128, 32)
    t1b = jnp.broadcast_to(t8.reshape(FEAT_DIM, 1).astype(jnp.float32),
                           (FEAT_DIM, LANE))

    pooled = fused_stem_head_pool(
        patches.astype(jnp.bfloat16), w0f, t0c, w1f, t1b,
        hw_valid=HWo, tile_hw=tile_hw)               # (B, FEAT_DIM)

    # nn.RNN(feat, feat, num_layers=2, batch_first=True) + nn.Linear(feat, 6)
    # RNN/Linear matmul operands in bf16 (f32 accumulate, tanh, biases);
    # final linear lane-padded to 128 output columns (sliced back below).
    bf = jnp.bfloat16
    wlin_p = jnp.pad(params["wlin"], ((0, 0), (0, LANE - LABEL_DIM))).astype(bf)
    blin_p = jnp.pad(params["blin"], ((0, 0), (0, LANE - LABEL_DIM)))
    out_p = rnn2_linear(pooled,
                        params["wih1"].astype(bf), params["whh1"].astype(bf),
                        params["b1"],
                        params["wih2"].astype(bf), params["whh2"].astype(bf),
                        params["b2"],
                        wlin_p, blin_p)              # (B, 128)
    return out_p[:, :LABEL_DIM]


def init_params(key):
    keys = jax.random.split(key, 12)

    def nrm(k, shape, scale):
        return scale * jax.random.normal(k, shape, dtype=jnp.float32)

    H = FEAT_DIM
    p = {}
    # stem conv weight, PyTorch layout (32, 1, 3, 3) -> (C0, 9) with k = kh*3+kw
    w_stem = nrm(keys[0], (STEM_CH, 1, 3, 3), 0.2)
    p["stem_w"] = w_stem.reshape(STEM_CH, KTAPS)
    p["stem_bn_gamma"] = 1.0 + 0.01 * jnp.arange(STEM_CH, dtype=jnp.float32)
    p["stem_bn_beta"] = 0.01 * jnp.arange(STEM_CH, dtype=jnp.float32)
    p["stem_bn_mean"] = 0.02 * jnp.arange(STEM_CH, dtype=jnp.float32)
    p["stem_bn_var"] = 1.0 + 0.03 * jnp.arange(STEM_CH, dtype=jnp.float32)
    # head 1x1 conv, PyTorch layout (FEAT_DIM, 32, 1, 1) -> (C1, C0)
    w_head = nrm(keys[1], (H, STEM_CH, 1, 1), 0.1)
    p["head_w"] = w_head[:, :, 0, 0]
    p["head_bn_gamma"] = 1.0 + 0.001 * jnp.arange(H, dtype=jnp.float32)
    p["head_bn_beta"] = 0.001 * jnp.arange(H, dtype=jnp.float32)
    p["head_bn_mean"] = 0.002 * jnp.arange(H, dtype=jnp.float32)
    p["head_bn_var"] = 1.0 + 0.003 * jnp.arange(H, dtype=jnp.float32)
    # RNN layers (PyTorch weight_*_l{0,1} are (H, in); stored transposed here)
    p["wih1"] = nrm(keys[2], (H, H), 0.05).T
    p["whh1"] = nrm(keys[3], (H, H), 0.05).T
    p["b1"] = (nrm(keys[4], (H,), 0.05) + nrm(keys[5], (H,), 0.05)).reshape(1, H)
    p["wih2"] = nrm(keys[6], (H, H), 0.05).T
    p["whh2"] = nrm(keys[7], (H, H), 0.05).T
    p["b2"] = (nrm(keys[8], (H,), 0.05) + nrm(keys[9], (H,), 0.05)).reshape(1, H)
    # final linear: PyTorch (label, H) -> (H, label)
    p["wlin"] = nrm(keys[10], (LABEL_DIM, H), 0.05).T
    p["blin"] = nrm(keys[11], (LABEL_DIM,), 0.05).reshape(1, LABEL_DIM)
    return p


if __name__ == "__main__":
    key = jax.random.PRNGKey(0)
    pkey, xkey = jax.random.split(key)
    params = init_params(pkey)

    B, T, Fdim = 2, 16, 16          # small-shape spectrogram-like input (B, T, F)
    x = jax.random.normal(xkey, (B, T, Fdim), dtype=jnp.float32)

    fwd = jax.jit(effnet_ori_forward)
    out = fwd(x, params)
    out = jax.block_until_ready(out)
    assert out.shape == (B, LABEL_DIM), out.shape
    assert bool(jnp.all(jnp.isfinite(out)))
    print("KERNEL_OK")
</pallas_src>

<mosaic_0001>
module attributes {stable_mosaic.version = 11 : i64} {
  func.func @_fused_stem_head_pool_kernel(%arg0: i32, %arg1: i32, %arg2: memref<1x9x128xbf16, #tpu.memory_space<vmem>>, %arg3: memref<32x9xf32, #tpu.memory_space<vmem>>, %arg4: memref<32x1xf32, #tpu.memory_space<vmem>>, %arg5: memref<128x32xbf16, #tpu.memory_space<vmem>>, %arg6: memref<128x128xf32, #tpu.memory_space<vmem>>, %arg7: memref<1x128x1xf32, #tpu.memory_space<vmem>>, %arg8: memref<128x128xf32, #tpu.memory_space<vmem>>) attributes {dimension_semantics = [#tpu.dimension_semantics<parallel>, #tpu.dimension_semantics<arbitrary>], iteration_bounds = array<i64: 2, 1>, scalar_prefetch = 0 : i64, scratch_operands = 1 : i64, tpu.core_type = #tpu.core_type<tc>, window_params = [{transform_indices = @transform_0, window_bounds = array<i64: 1, 9, 128>}, {pipeline_mode = #tpu.pipeline_mode<synchronous>, transform_indices = @transform_1, window_bounds = array<i64: 32, 9>}, {pipeline_mode = #tpu.pipeline_mode<synchronous>, transform_indices = @transform_2, window_bounds = array<i64: 32, 1>}, {pipeline_mode = #tpu.pipeline_mode<synchronous>, transform_indices = @transform_3, window_bounds = array<i64: 128, 32>}, {pipeline_mode = #tpu.pipeline_mode<synchronous>, transform_indices = @transform_4, window_bounds = array<i64: 128, 128>}, {transform_indices = @transform_5, window_bounds = array<i64: 1, 128, 1>}]} {
    %c0_i32 = arith.constant 0 : i32
    %0 = arith.cmpi eq, %arg1, %c0_i32 : i32
    %1 = arith.extui %0 : i1 to i32
    %c0_i32_0 = arith.constant 0 : i32
    %2 = arith.cmpi ne, %1, %c0_i32_0 : i32
    scf.if %2 {
      %cst_22 = arith.constant 0.000000e+00 : f32
      %102 = vector.broadcast %cst_22 : f32 to vector<128x128xf32>
      %c0_23 = arith.constant 0 : index
      %c0_24 = arith.constant 0 : index
      %103 = vector.load %arg8[%c0_23, %c0_24] : memref<128x128xf32, #tpu.memory_space<vmem>>, vector<128x128xf32>
      tpu.vector_store %arg8[%c0_23, %c0_24], %102 {strides = array<i32>} : memref<128x128xf32, #tpu.memory_space<vmem>>, vector<128x128xf32>,
    } else {
    }
    %c0 = arith.constant 0 : index
    %c0_1 = arith.constant 0 : index
    %3 = vector.load %arg3[%c0, %c0_1] : memref<32x9xf32, #tpu.memory_space<vmem>>, vector<32x9xf32>
    %c0_2 = arith.constant 0 : index
    %c0_3 = arith.constant 0 : index
    %4 = vector.load %arg4[%c0_2, %c0_3] : memref<32x1xf32, #tpu.memory_space<vmem>>, vector<32x1xf32>
    %c0_4 = arith.constant 0 : index
    %c0_5 = arith.constant 0 : index
    %5 = vector.load %arg5[%c0_4, %c0_5] : memref<128x32xbf16, #tpu.memory_space<vmem>>, vector<128x32xbf16>
    %cst = arith.constant 0.000000e+00 : f32
    %6 = vector.broadcast %cst : f32 to vector<128x128xf32>
    %c0_i32_6 = arith.constant 0 : i32
    %c128_i32 = arith.constant 128 : i32
    %7 = arith.muli %c0_i32_6, %c128_i32 : i32
    %8 = tpu.assume_multiple %7, 128 : i32
    %c0_7 = arith.constant 0 : index
    %c0_8 = arith.constant 0 : index
    %9 = arith.index_cast %8 : i32 to index
    %10 = vector.load %arg2[%c0_7, %c0_8, %9] : memref<1x9x128xbf16, #tpu.memory_space<vmem>>, vector<1x9x128xbf16>
    %11 = vector.shape_cast %10 : vector<1x9x128xbf16> to vector<9x128xbf16>
    %12 = arith.extf %11 : vector<9x128xbf16> to vector<9x128xf32>
    %13 = vector.extract_strided_slice %3 {offsets = [0, 0], sizes = [32, 1], strides = [1, 1]} : vector<32x9xf32> to vector<32x1xf32>
    %14 = vector.extract_strided_slice %12 {offsets = [0, 0], sizes = [1, 128], strides = [1, 1]} : vector<9x128xf32> to vector<1x128xf32>
    %15 = vector.broadcast %13 : vector<32x1xf32> to vector<32x128xf32>
    %16 = vector.broadcast %14 : vector<1x128xf32> to vector<32x128xf32>
    %17 = arith.mulf %15, %16 : vector<32x128xf32>
    %18 = vector.broadcast %4 : vector<32x1xf32> to vector<32x128xf32>
    %19 = arith.addf %18, %17 : vector<32x128xf32>
    %20 = vector.extract_strided_slice %3 {offsets = [0, 1], sizes = [32, 1], strides = [1, 1]} : vector<32x9xf32> to vector<32x1xf32>
    %21 = vector.extract_strided_slice %12 {offsets = [1, 0], sizes = [1, 128], strides = [1, 1]} : vector<9x128xf32> to vector<1x128xf32>
    %22 = vector.broadcast %20 : vector<32x1xf32> to vector<32x128xf32>
    %23 = vector.broadcast %21 : vector<1x128xf32> to vector<32x128xf32>
    %24 = arith.mulf %22, %23 : vector<32x128xf32>
    %25 = arith.addf %19, %24 : vector<32x128xf32>
    %26 = vector.extract_strided_slice %3 {offsets = [0, 2], sizes = [32, 1], strides = [1, 1]} : vector<32x9xf32> to vector<32x1xf32>
    %27 = vector.extract_strided_slice %12 {offsets = [2, 0], sizes = [1, 128], strides = [1, 1]} : vector<9x128xf32> to vector<1x128xf32>
    %28 = vector.broadcast %26 : vector<32x1xf32> to vector<32x128xf32>
    %29 = vector.broadcast %27 : vector<1x128xf32> to vector<32x128xf32>
    %30 = arith.mulf %28, %29 : vector<32x128xf32>
    %31 = arith.addf %25, %30 : vector<32x128xf32>
    %32 = vector.extract_strided_slice %3 {offsets = [0, 3], sizes = [32, 1], strides = [1, 1]} : vector<32x9xf32> to vector<32x1xf32>
    %33 = vector.extract_strided_slice %12 {offsets = [3, 0], sizes = [1, 128], strides = [1, 1]} : vector<9x128xf32> to vector<1x128xf32>
    %34 = vector.broadcast %32 : vector<32x1xf32> to vector<32x128xf32>
    %35 = vector.broadcast %33 : vector<1x128xf32> to vector<32x128xf32>
    %36 = arith.mulf %34, %35 : vector<32x128xf32>
    %37 = arith.addf %31, %36 : vector<32x128xf32>
    %38 = vector.extract_strided_slice %3 {offsets = [0, 4], sizes = [32, 1], strides = [1, 1]} : vector<32x9xf32> to vector<32x1xf32>
    %39 = vector.extract_strided_slice %12 {offsets = [4, 0], sizes = [1, 128], strides = [1, 1]} : vector<9x128xf32> to vector<1x128xf32>
    %40 = vector.broadcast %38 : vector<32x1xf32> to vector<32x128xf32>
    %41 = vector.broadcast %39 : vector<1x128xf32> to vector<32x128xf32>
    %42 = arith.mulf %40, %41 : vector<32x128xf32>
    %43 = arith.addf %37, %42 : vector<32x128xf32>
    %44 = vector.extract_strided_slice %3 {offsets = [0, 5], sizes = [32, 1], strides = [1, 1]} : vector<32x9xf32> to vector<32x1xf32>
    %45 = vector.extract_strided_slice %12 {offsets = [5, 0], sizes = [1, 128], strides = [1, 1]} : vector<9x128xf32> to vector<1x128xf32>
    %46 = vector.broadcast %44 : vector<32x1xf32> to vector<32x128xf32>
    %47 = vector.broadcast %45 : vector<1x128xf32> to vector<32x128xf32>
    %48 = arith.mulf %46, %47 : vector<32x128xf32>
    %49 = arith.addf %43, %48 : vector<32x128xf32>
    %50 = vector.extract_strided_slice %3 {offsets = [0, 6], sizes = [32, 1], strides = [1, 1]} : vector<32x9xf32> to vector<32x1xf32>
    %51 = vector.extract_strided_slice %12 {offsets = [6, 0], sizes = [1, 128], strides = [1, 1]} : vector<9x128xf32> to vector<1x128xf32>
    %52 = vector.broadcast %50 : vector<32x1xf32> to vector<32x128xf32>
    %53 = vector.broadcast %51 : vector<1x128xf32> to vector<32x128xf32>
    %54 = arith.mulf %52, %53 : vector<32x128xf32>
    %55 = arith.addf %49, %54 : vector<32x128xf32>
    %56 = vector.extract_strided_slice %3 {offsets = [0, 7], sizes = [32, 1], strides = [1, 1]} : vector<32x9xf32> to vector<32x1xf32>
    %57 = vector.extract_strided_slice %12 {offsets = [7, 0], sizes = [1, 128], strides = [1, 1]} : vector<9x128xf32> to vector<1x128xf32>
    %58 = vector.broadcast %56 : vector<32x1xf32> to vector<32x128xf32>
    %59 = vector.broadcast %57 : vector<1x128xf32> to vector<32x128xf32>
    %60 = arith.mulf %58, %59 : vector<32x128xf32>
    %61 = arith.addf %55, %60 : vector<32x128xf32>
    %62 = vector.extract_strided_slice %3 {offsets = [0, 8], sizes = [32, 1], strides = [1, 1]} : vector<32x9xf32> to vector<32x1xf32>
    %63 = vector.extract_strided_slice %12 {offsets = [8, 0], sizes = [1, 128], strides = [1, 1]} : vector<9x128xf32> to vector<1x128xf32>
    %64 = vector.broadcast %62 : vector<32x1xf32> to vector<32x128xf32>
    %65 = vector.broadcast %63 : vector<1x128xf32> to vector<32x128xf32>
    %66 = arith.mulf %64, %65 : vector<32x128xf32>
    %67 = arith.addf %61, %66 : vector<32x128xf32>
    %68 = arith.negf %67 : vector<32x128xf32>
    %69 = math.exp %68 : vector<32x128xf32>
    %cst_9 = arith.constant 1.000000e+00 : f32
    %70 = vector.broadcast %cst_9 : f32 to vector<32x128xf32>
    %71 = arith.addf %70, %69 : vector<32x128xf32>
    %72 = arith.divf %70, %71 : vector<32x128xf32>
    %73 = arith.mulf %67, %72 : vector<32x128xf32>
    %74 = arith.truncf %73 : vector<32x128xf32> to vector<32x128xbf16>
    %cst_10 = arith.constant dense<0.000000e+00> : vector<128x128xf32>
    %75 = tpu.matmul %5, %74, %cst_10 {dimension_numbers = #tpu.dot_dimension_numbers<[1], [0], [0], [1], [0, 0, 1, 1], [], []>} : vector<128x32xbf16>, vector<32x128xbf16>, vector<128x128xf32> -> vector<128x128xf32>
    %c0_11 = arith.constant 0 : index
    %c0_12 = arith.constant 0 : index
    %76 = vector.load %arg6[%c0_11, %c0_12] : memref<128x128xf32, #tpu.memory_space<vmem>>, vector<128x128xf32>
    %77 = arith.addf %75, %76 : vector<128x128xf32>
    %78 = arith.negf %77 : vector<128x128xf32>
    %79 = math.exp %78 : vector<128x128xf32>
    %cst_13 = arith.constant 1.000000e+00 : f32
    %80 = vector.broadcast %cst_13 : f32 to vector<128x128xf32>
    %81 = arith.addf %80, %79 : vector<128x128xf32>
    %82 = arith.divf %80, %81 : vector<128x128xf32>
    %83 = arith.mulf %77, %82 : vector<128x128xf32>
    %84 = tpu.iota {dimensions = array<i32: 1>} : vector<1x128xi32>
    %c128_i32_14 = arith.constant 128 : i32
    %85 = arith.muli %arg1, %c128_i32_14 : i32
    %86 = arith.addi %85, %8 : i32
    %87 = vector.broadcast %86 : i32 to vector<1x128xi32>
    %88 = arith.addi %84, %87 : vector<1x128xi32>
    %c64_i32 = arith.constant 64 : i32
    %89 = vector.broadcast %c64_i32 : i32 to vector<1x128xi32>
    %90 = arith.cmpi slt, %88, %89 : vector<1x128xi32>
    %cst_15 = arith.constant 0.000000e+00 : f32
    %91 = vector.shape_cast %90 : vector<1x128xi1> to vector<1x128xi1>
    %92 = vector.broadcast %91 : vector<1x128xi1> to vector<128x128xi1>
    %93 = vector.broadcast %cst_15 : f32 to vector<128x128xf32>
    %94 = arith.select %92, %83, %93 : vector<128x128xi1>, vector<128x128xf32>
    %95 = arith.addf %6, %94 : vector<128x128xf32>
    %c1_i32 = arith.constant 1 : i32
    %c0_16 = arith.constant 0 : index
    %c0_17 = arith.constant 0 : index
    %96 = vector.load %arg8[%c0_16, %c0_17] : memref<128x128xf32, #tpu.memory_space<vmem>>, vector<128x128xf32>
    %97 = arith.addf %96, %95 : vector<128x128xf32>
    %c0_18 = arith.constant 0 : index
    %c0_19 = arith.constant 0 : index
    %98 = vector.load %arg8[%c0_18, %c0_19] : memref<128x128xf32, #tpu.memory_space<vmem>>, vector<128x128xf32>
    tpu.vector_store %arg8[%c0_18, %c0_19], %97 {strides = array<i32>} : memref<128x128xf32, #tpu.memory_space<vmem>>, vector<128x128xf32>,
    %c0_i32_20 = arith.constant 0 : i32
    %99 = arith.cmpi eq, %arg1, %c0_i32_20 : i32
    %100 = arith.extui %99 : i1 to i32
    %c0_i32_21 = arith.constant 0 : i32
    %101 = arith.cmpi ne, %100, %c0_i32_21 : i32
    scf.if %101 {
      %c0_22 = arith.constant 0 : index
      %c0_23 = arith.constant 0 : index
      %102 = vector.load %arg8[%c0_22, %c0_23] : memref<128x128xf32, #tpu.memory_space<vmem>>, vector<128x128xf32>
      %cst_24 = arith.constant dense<0.000000e+00> : vector<128xf32>
      %103 = vector.multi_reduction <add>, %102, %cst_24 [1] : vector<128x128xf32> to vector<128xf32>
      %104 = vector.shape_cast %103 : vector<128xf32> to vector<128x1xf32>
      %cst_25 = arith.constant 1.562500e-02 : f32
      %105 = vector.broadcast %cst_25 : f32 to vector<128x1xf32>
      %106 = arith.mulf %104, %105 : vector<128x1xf32>
      %c0_26 = arith.constant 0 : index
      %c0_27 = arith.constant 0 : index
      %c0_28 = arith.constant 0 : index
      %107 = vector.load %arg7[%c0_26, %c0_27, %c0_28] : memref<1x128x1xf32, #tpu.memory_space<vmem>>, vector<1x128x1xf32>
      %108 = vector.shape_cast %107 : vector<1x128x1xf32> to vector<128x1xf32>
      %109 = vector.shape_cast %106 : vector<128x1xf32> to vector<1x128x1xf32>
      tpu.vector_store %arg7[%c0_26, %c0_27, %c0_28], %109 {strides = array<i32>} : memref<1x128x1xf32, #tpu.memory_space<vmem>>, vector<1x128x1xf32>,
    } else {
    }
    return
  }
  func.func @transform_0(%arg0: i32, %arg1: i32) -> (i32, i32, i32) {
    %c0_i32 = arith.constant 0 : i32
    %c0_i32_0 = arith.constant 0 : i32
    return %arg0, %c0_i32, %arg1 : i32, i32, i32
  }
  func.func @transform_1(%arg0: i32, %arg1: i32) -> (i32, i32) {
    %c0_i32 = arith.constant 0 : i32
    %c0_i32_0 = arith.constant 0 : i32
    %c0_i32_1 = arith.constant 0 : i32
    return %c0_i32, %c0_i32_0 : i32, i32
  }
  func.func @transform_2(%arg0: i32, %arg1: i32) -> (i32, i32) {
    %c0_i32 = arith.constant 0 : i32
    %c0_i32_0 = arith.constant 0 : i32
    %c0_i32_1 = arith.constant 0 : i32
    return %c0_i32, %c0_i32_0 : i32, i32
  }
  func.func @transform_3(%arg0: i32, %arg1: i32) -> (i32, i32) {
    %c0_i32 = arith.constant 0 : i32
    %c0_i32_0 = arith.constant 0 : i32
    %c0_i32_1 = arith.constant 0 : i32
    return %c0_i32, %c0_i32_0 : i32, i32
  }
  func.func @transform_4(%arg0: i32, %arg1: i32) -> (i32, i32) {
    %c0_i32 = arith.constant 0 : i32
    %c0_i32_0 = arith.constant 0 : i32
    %c0_i32_1 = arith.constant 0 : i32
    return %c0_i32, %c0_i32_0 : i32, i32
  }
  func.func @transform_5(%arg0: i32, %arg1: i32) -> (i32, i32, i32) {
    %c0_i32 = arith.constant 0 : i32
    %c0_i32_0 = arith.constant 0 : i32
    %c0_i32_1 = arith.constant 0 : i32
    return %arg0, %c0_i32, %c0_i32_0 : i32, i32, i32
  }
}

module attributes {stable_mosaic.version = 11 : i64} {
  func.func @_rnn2_linear_kernel(%arg0: i32, %arg1: memref<2x128xf32, #tpu.memory_space<vmem>>, %arg2: memref<128x128xbf16, #tpu.memory_space<vmem>>, %arg3: memref<128x128xbf16, #tpu.memory_space<vmem>>, %arg4: memref<1x128xf32, #tpu.memory_space<vmem>>, %arg5: memref<128x128xbf16, #tpu.memory_space<vmem>>, %arg6: memref<128x128xbf16, #tpu.memory_space<vmem>>, %arg7: memref<1x128xf32, #tpu.memory_space<vmem>>, %arg8: memref<128x128xbf16, #tpu.memory_space<vmem>>, %arg9: memref<1x128xf32, #tpu.memory_space<vmem>>, %arg10: memref<2x128xf32, #tpu.memory_space<vmem>>, %arg11: memref<2x128xf32, #tpu.memory_space<vmem>>, %arg12: memref<2x128xf32, #tpu.memory_space<vmem>>) attributes {dimension_semantics = [#tpu.dimension_semantics<arbitrary>], iteration_bounds = array<i64: 1>, scalar_prefetch = 0 : i64, scratch_operands = 2 : i64, tpu.core_type = #tpu.core_type<tc>, window_params = [{pipeline_mode = #tpu.pipeline_mode<synchronous>, transform_indices = @transform_0, window_bounds = array<i64: 2, 128>}, {pipeline_mode = #tpu.pipeline_mode<synchronous>, transform_indices = @transform_1, window_bounds = array<i64: 128, 128>}, {pipeline_mode = #tpu.pipeline_mode<synchronous>, transform_indices = @transform_2, window_bounds = array<i64: 128, 128>}, {pipeline_mode = #tpu.pipeline_mode<synchronous>, transform_indices = @transform_3, window_bounds = array<i64: 1, 128>}, {pipeline_mode = #tpu.pipeline_mode<synchronous>, transform_indices = @transform_4, window_bounds = array<i64: 128, 128>}, {pipeline_mode = #tpu.pipeline_mode<synchronous>, transform_indices = @transform_5, window_bounds = array<i64: 128, 128>}, {pipeline_mode = #tpu.pipeline_mode<synchronous>, transform_indices = @transform_6, window_bounds = array<i64: 1, 128>}, {pipeline_mode = #tpu.pipeline_mode<synchronous>, transform_indices = @transform_7, window_bounds = array<i64: 128, 128>}, {pipeline_mode = #tpu.pipeline_mode<synchronous>, transform_indices = @transform_8, window_bounds = array<i64: 1, 128>}, {pipeline_mode = #tpu.pipeline_mode<synchronous>, transform_indices = @transform_9, window_bounds = array<i64: 2, 128>}]} {
    %c0 = arith.constant 0 : index
    %c0_0 = arith.constant 0 : index
    %0 = vector.load %arg1[%c0, %c0_0] : memref<2x128xf32, #tpu.memory_space<vmem>>, vector<2x128xf32>
    %1 = arith.truncf %0 : vector<2x128xf32> to vector<2x128xbf16>
    %c0_1 = arith.constant 0 : index
    %c0_2 = arith.constant 0 : index
    %2 = vector.load %arg2[%c0_1, %c0_2] : memref<128x128xbf16, #tpu.memory_space<vmem>>, vector<128x128xbf16>
    %cst = arith.constant dense<0.000000e+00> : vector<2x128xf32>
    %3 = tpu.matmul %1, %2, %cst {dimension_numbers = #tpu.dot_dimension_numbers<[1], [0], [0], [1], [0, 0, 1, 1], [], []>} : vector<2x128xbf16>, vector<128x128xbf16>, vector<2x128xf32> -> vector<2x128xf32>
    %c0_3 = arith.constant 0 : index
    %c0_4 = arith.constant 0 : index
    %4 = vector.load %arg4[%c0_3, %c0_4] : memref<1x128xf32, #tpu.memory_space<vmem>>, vector<1x128xf32>
    %5 = vector.broadcast %4 : vector<1x128xf32> to vector<2x128xf32>
    %6 = arith.addf %3, %5 : vector<2x128xf32>
    %c0_5 = arith.constant 0 : index
    %c0_6 = arith.constant 0 : index
    %7 = vector.load %arg11[%c0_5, %c0_6] : memref<2x128xf32, #tpu.memory_space<vmem>>, vector<2x128xf32>
    tpu.vector_store %arg11[%c0_5, %c0_6], %6 {strides = array<i32>} : memref<2x128xf32, #tpu.memory_space<vmem>>, vector<2x128xf32>,
    %cst_7 = arith.constant 0.000000e+00 : bf16
    %8 = vector.broadcast %cst_7 : bf16 to vector<1x128xbf16>
    %c0_8 = arith.constant 0 : index
    %c0_9 = arith.constant 0 : index
    %9 = vector.load %arg3[%c0_8, %c0_9] : memref<128x128xbf16, #tpu.memory_space<vmem>>, vector<128x128xbf16>
    %c0_i32 = arith.constant 0 : i32
    %10 = arith.index_cast %c0_i32 : i32 to index
    %c0_10 = arith.constant 0 : index
    %11 = vector.load %arg11[%10, %c0_10] : memref<2x128xf32, #tpu.memory_space<vmem>>, vector<1x128xf32>
    %cst_11 = arith.constant dense<0.000000e+00> : vector<1x128xf32>
    %12 = tpu.matmul %8, %9, %cst_11 {dimension_numbers = #tpu.dot_dimension_numbers<[1], [0], [0], [1], [0, 0, 1, 1], [], []>} : vector<1x128xbf16>, vector<128x128xbf16>, vector<1x128xf32> -> vector<1x128xf32>
    %13 = arith.addf %11, %12 : vector<1x128xf32>
    %14 = math.tanh %13 : vector<1x128xf32>
    %15 = arith.index_cast %c0_i32 : i32 to index
    %c0_12 = arith.constant 0 : index
    %16 = vector.load %arg11[%15, %c0_12] : memref<2x128xf32, #tpu.memory_space<vmem>>, vector<1x128xf32>
    tpu.vector_store %arg11[%15, %c0_12], %14 {strides = array<i32>} : memref<2x128xf32, #tpu.memory_space<vmem>>, vector<1x128xf32>,
    %17 = arith.truncf %14 : vector<1x128xf32> to vector<1x128xbf16>
    %c1_i32 = arith.constant 1 : i32
    %18 = arith.index_cast %c1_i32 : i32 to index
    %c0_13 = arith.constant 0 : index
    %19 = vector.load %arg11[%18, %c0_13] : memref<2x128xf32, #tpu.memory_space<vmem>>, vector<1x128xf32>
    %cst_14 = arith.constant dense<0.000000e+00> : vector<1x128xf32>
    %20 = tpu.matmul %17, %9, %cst_14 {dimension_numbers = #tpu.dot_dimension_numbers<[1], [0], [0], [1], [0, 0, 1, 1], [], []>} : vector<1x128xbf16>, vector<128x128xbf16>, vector<1x128xf32> -> vector<1x128xf32>
    %21 = arith.addf %19, %20 : vector<1x128xf32>
    %22 = math.tanh %21 : vector<1x128xf32>
    %23 = arith.index_cast %c1_i32 : i32 to index
    %c0_15 = arith.constant 0 : index
    %24 = vector.load %arg11[%23, %c0_15] : memref<2x128xf32, #tpu.memory_space<vmem>>, vector<1x128xf32>
    tpu.vector_store %arg11[%23, %c0_15], %22 {strides = array<i32>} : memref<2x128xf32, #tpu.memory_space<vmem>>, vector<1x128xf32>,
    %25 = arith.truncf %22 : vector<1x128xf32> to vector<1x128xbf16>
    %c2_i32 = arith.constant 2 : i32
    %c0_16 = arith.constant 0 : index
    %c0_17 = arith.constant 0 : index
    %26 = vector.load %arg11[%c0_16, %c0_17] : memref<2x128xf32, #tpu.memory_space<vmem>>, vector<2x128xf32>
    %27 = arith.truncf %26 : vector<2x128xf32> to vector<2x128xbf16>
    %c0_18 = arith.constant 0 : index
    %c0_19 = arith.constant 0 : index
    %28 = vector.load %arg5[%c0_18, %c0_19] : memref<128x128xbf16, #tpu.memory_space<vmem>>, vector<128x128xbf16>
    %cst_20 = arith.constant dense<0.000000e+00> : vector<2x128xf32>
    %29 = tpu.matmul %27, %28, %cst_20 {dimension_numbers = #tpu.dot_dimension_numbers<[1], [0], [0], [1], [0, 0, 1, 1], [], []>} : vector<2x128xbf16>, vector<128x128xbf16>, vector<2x128xf32> -> vector<2x128xf32>
    %c0_21 = arith.constant 0 : index
    %c0_22 = arith.constant 0 : index
    %30 = vector.load %arg7[%c0_21, %c0_22] : memref<1x128xf32, #tpu.memory_space<vmem>>, vector<1x128xf32>
    %31 = vector.broadcast %30 : vector<1x128xf32> to vector<2x128xf32>
    %32 = arith.addf %29, %31 : vector<2x128xf32>
    %c0_23 = arith.constant 0 : index
    %c0_24 = arith.constant 0 : index
    %33 = vector.load %arg12[%c0_23, %c0_24] : memref<2x128xf32, #tpu.memory_space<vmem>>, vector<2x128xf32>
    tpu.vector_store %arg12[%c0_23, %c0_24], %32 {strides = array<i32>} : memref<2x128xf32, #tpu.memory_space<vmem>>, vector<2x128xf32>,
    %c0_25 = arith.constant 0 : index
    %c0_26 = arith.constant 0 : index
    %34 = vector.load %arg6[%c0_25, %c0_26] : memref<128x128xbf16, #tpu.memory_space<vmem>>, vector<128x128xbf16>
    %c0_i32_27 = arith.constant 0 : i32
    %35 = arith.index_cast %c0_i32_27 : i32 to index
    %c0_28 = arith.constant 0 : index
    %36 = vector.load %arg12[%35, %c0_28] : memref<2x128xf32, #tpu.memory_space<vmem>>, vector<1x128xf32>
    %cst_29 = arith.constant dense<0.000000e+00> : vector<1x128xf32>
    %37 = tpu.matmul %8, %34, %cst_29 {dimension_numbers = #tpu.dot_dimension_numbers<[1], [0], [0], [1], [0, 0, 1, 1], [], []>} : vector<1x128xbf16>, vector<128x128xbf16>, vector<1x128xf32> -> vector<1x128xf32>
    %38 = arith.addf %36, %37 : vector<1x128xf32>
    %39 = math.tanh %38 : vector<1x128xf32>
    %40 = arith.index_cast %c0_i32_27 : i32 to index
    %c0_30 = arith.constant 0 : index
    %41 = vector.load %arg12[%40, %c0_30] : memref<2x128xf32, #tpu.memory_space<vmem>>, vector<1x128xf32>
    tpu.vector_store %arg12[%40, %c0_30], %39 {strides = array<i32>} : memref<2x128xf32, #tpu.memory_space<vmem>>, vector<1x128xf32>,
    %42 = arith.truncf %39 : vector<1x128xf32> to vector<1x128xbf16>
    %c1_i32_31 = arith.constant 1 : i32
    %43 = arith.index_cast %c1_i32_31 : i32 to index
    %c0_32 = arith.constant 0 : index
    %44 = vector.load %arg12[%43, %c0_32] : memref<2x128xf32, #tpu.memory_space<vmem>>, vector<1x128xf32>
    %cst_33 = arith.constant dense<0.000000e+00> : vector<1x128xf32>
    %45 = tpu.matmul %42, %34, %cst_33 {dimension_numbers = #tpu.dot_dimension_numbers<[1], [0], [0], [1], [0, 0, 1, 1], [], []>} : vector<1x128xbf16>, vector<128x128xbf16>, vector<1x128xf32> -> vector<1x128xf32>
    %46 = arith.addf %44, %45 : vector<1x128xf32>
    %47 = math.tanh %46 : vector<1x128xf32>
    %48 = arith.index_cast %c1_i32_31 : i32 to index
    %c0_34 = arith.constant 0 : index
    %49 = vector.load %arg12[%48, %c0_34] : memref<2x128xf32, #tpu.memory_space<vmem>>, vector<1x128xf32>
    tpu.vector_store %arg12[%48, %c0_34], %47 {strides = array<i32>} : memref<2x128xf32, #tpu.memory_space<vmem>>, vector<1x128xf32>,
    %50 = arith.truncf %47 : vector<1x128xf32> to vector<1x128xbf16>
    %c2_i32_35 = arith.constant 2 : i32
    %c0_36 = arith.constant 0 : index
    %c0_37 = arith.constant 0 : index
    %51 = vector.load %arg12[%c0_36, %c0_37] : memref<2x128xf32, #tpu.memory_space<vmem>>, vector<2x128xf32>
    %52 = arith.truncf %51 : vector<2x128xf32> to vector<2x128xbf16>
    %c0_38 = arith.constant 0 : index
    %c0_39 = arith.constant 0 : index
    %53 = vector.load %arg8[%c0_38, %c0_39] : memref<128x128xbf16, #tpu.memory_space<vmem>>, vector<128x128xbf16>
    %cst_40 = arith.constant dense<0.000000e+00> : vector<2x128xf32>
    %54 = tpu.matmul %52, %53, %cst_40 {dimension_numbers = #tpu.dot_dimension_numbers<[1], [0], [0], [1], [0, 0, 1, 1], [], []>} : vector<2x128xbf16>, vector<128x128xbf16>, vector<2x128xf32> -> vector<2x128xf32>
    %c0_41 = arith.constant 0 : index
    %c0_42 = arith.constant 0 : index
    %55 = vector.load %arg9[%c0_41, %c0_42] : memref<1x128xf32, #tpu.memory_space<vmem>>, vector<1x128xf32>
    %56 = vector.broadcast %55 : vector<1x128xf32> to vector<2x128xf32>
    %57 = arith.addf %54, %56 : vector<2x128xf32>
    %c0_43 = arith.constant 0 : index
    %c0_44 = arith.constant 0 : index
    %58 = vector.load %arg10[%c0_43, %c0_44] : memref<2x128xf32, #tpu.memory_space<vmem>>, vector<2x128xf32>
    tpu.vector_store %arg10[%c0_43, %c0_44], %57 {strides = array<i32>} : memref<2x128xf32, #tpu.memory_space<vmem>>, vector<2x128xf32>,
    return
  }
  func.func @transform_0(%arg0: i32) -> (i32, i32) {
    %c0_i32 = arith.constant 0 : i32
    %c0_i32_0 = arith.constant 0 : i32
    %c0_i32_1 = arith.constant 0 : i32
    return %c0_i32, %c0_i32_0 : i32, i32
  }
  func.func @transform_1(%arg0: i32) -> (i32, i32) {
    %c0_i32 = arith.constant 0 : i32
    %c0_i32_0 = arith.constant 0 : i32
    %c0_i32_1 = arith.constant 0 : i32
    return %c0_i32, %c0_i32_0 : i32, i32
  }
  func.func @transform_2(%arg0: i32) -> (i32, i32) {
    %c0_i32 = arith.constant 0 : i32
    %c0_i32_0 = arith.constant 0 : i32
    %c0_i32_1 = arith.constant 0 : i32
    return %c0_i32, %c0_i32_0 : i32, i32
  }
  func.func @transform_3(%arg0: i32) -> (i32, i32) {
    %c0_i32 = arith.constant 0 : i32
    %c0_i32_0 = arith.constant 0 : i32
    %c0_i32_1 = arith.constant 0 : i32
    return %c0_i32, %c0_i32_0 : i32, i32
  }
  func.func @transform_4(%arg0: i32) -> (i32, i32) {
    %c0_i32 = arith.constant 0 : i32
    %c0_i32_0 = arith.constant 0 : i32
    %c0_i32_1 = arith.constant 0 : i32
    return %c0_i32, %c0_i32_0 : i32, i32
  }
  func.func @transform_5(%arg0: i32) -> (i32, i32) {
    %c0_i32 = arith.constant 0 : i32
    %c0_i32_0 = arith.constant 0 : i32
    %c0_i32_1 = arith.constant 0 : i32
    return %c0_i32, %c0_i32_0 : i32, i32
  }
  func.func @transform_6(%arg0: i32) -> (i32, i32) {
    %c0_i32 = arith.constant 0 : i32
    %c0_i32_0 = arith.constant 0 : i32
    %c0_i32_1 = arith.constant 0 : i32
    return %c0_i32, %c0_i32_0 : i32, i32
  }
  func.func @transform_7(%arg0: i32) -> (i32, i32) {
    %c0_i32 = arith.constant 0 : i32
    %c0_i32_0 = arith.constant 0 : i32
    %c0_i32_1 = arith.constant 0 : i32
    return %c0_i32, %c0_i32_0 : i32, i32
  }
  func.func @transform_8(%arg0: i32) -> (i32, i32) {
    %c0_i32 = arith.constant 0 : i32
    %c0_i32_0 = arith.constant 0 : i32
    %c0_i32_1 = arith.constant 0 : i32
    return %c0_i32, %c0_i32_0 : i32, i32
  }
  func.func @transform_9(%arg0: i32) -> (i32, i32) {
    %c0_i32 = arith.constant 0 : i32
    %c0_i32_0 = arith.constant 0 : i32
    %c0_i32_1 = arith.constant 0 : i32
    return %c0_i32, %c0_i32_0 : i32, i32
  }
}

</mosaic_0001>

<llo_original>
// kernel: effnet_ori_forward.2
$region0: #{effnet_ori_forward.2}
  #allocation0 [shape = 'u32[]', space=smem, size = 0x4, offset = 0x4, fixed_abs, tag = 'smem constant byte address 0x4 - core index']
  #allocation1 [shape = 'u32[144,128]{1,0:T(1,128)}', space=vmem, size = 0x12000, scoped, tag = 'internal scratch']
  #allocation2 [shape = 'f32[128,128]{1,0:T(8,128)}', space=vmem, size = 0x10000, scoped, tag = 'scratch operand']
  %s0 = inlined_call_operand.vmem [shape: bf16[2,9,128], index: 0, kind: input, shape index: {}]
  %s1 = inlined_call_operand.vmem [shape: f32[32,9], index: 1, kind: input, shape index: {}]
  %s2 = inlined_call_operand.vmem [shape: f32[32,1], index: 2, kind: input, shape index: {}]
  %s3 = inlined_call_operand.vmem [shape: bf16[128,32], index: 3, kind: input, shape index: {}]
  %s4 = inlined_call_operand.vmem [shape: f32[128,128], index: 4, kind: input, shape index: {}]
  %s5 = inlined_call_operand.vmem [shape: f32[2,128,1], index: 5, kind: output, shape index: {}]
  %s6 = sld [smem:[#allocation0]]
  $region61: #{effnet_ori_forward.2} parent=0
    _
  %s8 = ssub.s32 1, %s6
  %s9 = scalar_select 0, %s8, %s6
  loop: start=0, step=1, limit=4
  $region2: #{effnet_ori_forward.2} parent=0 // loop_pre_header
    _
  $region3: #{effnet_ori_forward.2} parent=0 // loop_header
    %s11 = sphi 0, %s15
    %p12 = scmp.ge.s32.totalorder %s11, 4
    %s18 = sphi 0, %s30
    %s19 = sphi 0, %s26
    %s20 = sphi 0, %s18
    %s21 = sphi 0, %s19
    %s22 = sphi 0, %s20
    %s23 = sphi 0, %s21
    %s35 = sphi 0, %s37
    %s38 = sphi 0, %s35
    %s39 = sphi 0, %s38
    %s55 = sphi 0, %s39
    %s59 = sphi 0, %s59
    %s61 = sphi 0, %s59
    %s62 = sphi 0, %s61
    %s76 = sphi 0, %s62
    %s80 = sphi 0, %s80
    %s82 = sphi 0, %s80
    %s83 = sphi 0, %s82
    %s97 = sphi 0, %s83
    %s101 = sphi 0, %s101
    %s103 = sphi 0, %s101
    %s104 = sphi 0, %s103
    %s118 = sphi 0, %s104
    %s122 = sphi 0, %s122
    %s124 = sphi 0, %s122
    %s125 = sphi 0, %s124
    %s139 = sphi 0, %s125
    %s145 = sphi 0, %s147
    %s148 = sphi 0, %s145
    %s149 = sphi 0, %s148
    %s165 = sphi 0, %s149
  $region4: #{effnet_ori_forward.2} parent=0 // loop_header_branch
    %14 = sbr.rel (%p12) target = $region8
  $region5: #{effnet_ori_forward.2} parent=0 // loop_body
    %s16 = ssub.s32 %s11, 1
    %s17 = ssub.s32 %s11, 2
    %s24 = sadd.s32 1, %s19
    %p25 = scmp.ge.s32.totalorder %s24, 1
    %s26 = scalar_select %p25, 0, %s24
    %s27 = sadd.s32 1, %s18
    %s28 = scalar_select %p25, %s27, %s18
    %p29 = scmp.ge.s32.totalorder %s28, 2
    %s30 = scalar_select %p29, 0, %s28
    %s31 = ssub.s32 %s18, %s30
    %s32 = ssub.s32 %s19, %s26
    %s33 = sor.u32 %s31, %s32
    %p34 = scmp.eq.s32.totalorder %s33, 0
    %s36 = sadd.s32 %s35, 1
    %s37 = scalar_select %p34, %s35, %s36
    %p40 = pneg %p34
    %p41 = scmp.eq.s32.totalorder %s11, 1
    %p42 = por %p40, %p41
    %p43 = scmp.ne.s32.totalorder %s35, %s38
    %p44 = scmp.eq.s32.totalorder %s11, 0
    %p45 = por %p43, %p44
    %p46 = scmp.ne.s32.totalorder %s35, %s38
    %p47 = scmp.eq.s32.totalorder %s16, 1
    %p48 = por %p46, %p47
    %p49 = scmp.ne.s32.totalorder %s38, %s39
    %p50 = scmp.eq.s32.totalorder %s16, 0
    %p51 = por %p49, %p50
    %p52 = scmp.ne.s32.totalorder %s38, %s39
    %p53 = scmp.eq.s32.totalorder %s17, 1
    %p54 = por %p52, %p53
    %p56 = scmp.ne.s32.totalorder %s39, %s55
    %p57 = scmp.eq.s32.totalorder %s17, 0
    %p58 = por %p56, %p57
    %s60 = sadd.s32 %s59, 1
    %p63 = scmp.eq.s32.totalorder %s11, 1
    %p64 = scmp.ne.s32.totalorder %s59, %s61
    %p65 = scmp.eq.s32.totalorder %s11, 0
    %p66 = por %p64, %p65
    %p67 = scmp.ne.s32.totalorder %s59, %s61
    %p68 = scmp.eq.s32.totalorder %s16, 1
    %p69 = por %p67, %p68
    %p70 = scmp.ne.s32.totalorder %s61, %s62
    %p71 = scmp.eq.s32.totalorder %s16, 0
    %p72 = por %p70, %p71
    %p73 = scmp.ne.s32.totalorder %s61, %s62
    %p74 = scmp.eq.s32.totalorder %s17, 1
    %p75 = por %p73, %p74
    %p77 = scmp.ne.s32.totalorder %s62, %s76
    %p78 = scmp.eq.s32.totalorder %s17, 0
    %p79 = por %p77, %p78
    %s81 = sadd.s32 %s80, 1
    %p84 = scmp.eq.s32.totalorder %s11, 1
    %p85 = scmp.ne.s32.totalorder %s80, %s82
    %p86 = scmp.eq.s32.totalorder %s11, 0
    %p87 = por %p85, %p86
    %p88 = scmp.ne.s32.totalorder %s80, %s82
    %p89 = scmp.eq.s32.totalorder %s16, 1
    %p90 = por %p88, %p89
    %p91 = scmp.ne.s32.totalorder %s82, %s83
    %p92 = scmp.eq.s32.totalorder %s16, 0
    %p93 = por %p91, %p92
    %p94 = scmp.ne.s32.totalorder %s82, %s83
    %p95 = scmp.eq.s32.totalorder %s17, 1
    %p96 = por %p94, %p95
    %p98 = scmp.ne.s32.totalorder %s83, %s97
    %p99 = scmp.eq.s32.totalorder %s17, 0
    %p100 = por %p98, %p99
    %s102 = sadd.s32 %s101, 1
    %p105 = scmp.eq.s32.totalorder %s11, 1
    %p106 = scmp.ne.s32.totalorder %s101, %s103
    %p107 = scmp.eq.s32.totalorder %s11, 0
    %p108 = por %p106, %p107
    %p109 = scmp.ne.s32.totalorder %s101, %s103
    %p110 = scmp.eq.s32.totalorder %s16, 1
    %p111 = por %p109, %p110
    %p112 = scmp.ne.s32.totalorder %s103, %s104
    %p113 = scmp.eq.s32.totalorder %s16, 0
    %p114 = por %p112, %p113
    %p115 = scmp.ne.s32.totalorder %s103, %s104
    %p116 = scmp.eq.s32.totalorder %s17, 1
    %p117 = por %p115, %p116
    %p119 = scmp.ne.s32.totalorder %s104, %s118
    %p120 = scmp.eq.s32.totalorder %s17, 0
    %p121 = por %p119, %p120
    %s123 = sadd.s32 %s122, 1
    %p126 = scmp.eq.s32.totalorder %s11, 1
    %p127 = scmp.ne.s32.totalorder %s122, %s124
    %p128 = scmp.eq.s32.totalorder %s11, 0
    %p129 = por %p127, %p128
    %p130 = scmp.ne.s32.totalorder %s122, %s124
    %p131 = scmp.eq.s32.totalorder %s16, 1
    %p132 = por %p130, %p131
    %p133 = scmp.ne.s32.totalorder %s124, %s125
    %p134 = scmp.eq.s32.totalorder %s16, 0
    %p135 = por %p133, %p134
    %p136 = scmp.ne.s32.totalorder %s124, %s125
    %p137 = scmp.eq.s32.totalorder %s17, 1
    %p138 = por %p136, %p137
    %p140 = scmp.ne.s32.totalorder %s125, %s139
    %p141 = scmp.eq.s32.totalorder %s17, 0
    %p142 = por %p140, %p141
    %s143 = ssub.s32 %s18, %s30
    %p144 = scmp.eq.s32.totalorder %s143, 0
    %s146 = sadd.s32 %s145, 1
    %s147 = scalar_select %p144, %s145, %s146
    %p150 = pneg %p144
    %p151 = scmp.eq.s32.totalorder %s11, 1
    %p152 = por %p150, %p151
    %p153 = scmp.ne.s32.totalorder %s145, %s148
    %p154 = scmp.eq.s32.totalorder %s11, 0
    %p155 = por %p153, %p154
    %p156 = scmp.ne.s32.totalorder %s145, %s148
    %p157 = scmp.eq.s32.totalorder %s16, 1
    %p158 = por %p156, %p157
    %p159 = scmp.ne.s32.totalorder %s148, %s149
    %p160 = scmp.eq.s32.totalorder %s16, 0
    %p161 = por %p159, %p160
    %p162 = scmp.ne.s32.totalorder %s148, %s149
    %p163 = scmp.eq.s32.totalorder %s17, 1
    %p164 = por %p162, %p163
    %p166 = scmp.ne.s32.totalorder %s149, %s165
    %p167 = scmp.eq.s32.totalorder %s17, 0
    %p168 = por %p166, %p167
    %p169 = scmp.le.s32.totalorder 1, %s11
    %p170 = scmp.lt.s32.totalorder %s11, 3
    %p171 = pnand %p169, %p170
    %p172 = pneg %p171
    // Predicated region
    $region9: #{effnet_ori_forward.2} parent=5 // pred_check
      _
    $region10: #{effnet_ori_forward.2} parent=5 // pred_check_branch
      %174 = sbr.rel (%p171) target = $region12
    $region11: #{effnet_ori_forward.2} parent=5 // pred_region
      %s175 = ssub.s32 %s11, 1
      // Predicated region
      $region13: #{effnet_ori_forward.2} parent=11 // pred_check
        %p176 = pneg %p72
      $region14: #{effnet_ori_forward.2} parent=11 // pred_check_branch
        %178 = sbr.rel (%p176) target = $region16
      $region15: #{effnet_ori_forward.2} parent=11 // pred_region
        _
      $region16: #{effnet_ori_forward.2} parent=11 // pred_fallthru
        _
      // Predicated region
      $region17: #{effnet_ori_forward.2} parent=11 // pred_check
        %p179 = pneg %p93
      $region18: #{effnet_ori_forward.2} parent=11 // pred_check_branch
        %181 = sbr.rel (%p179) target = $region20
      $region19: #{effnet_ori_forward.2} parent=11 // pred_region
        _
      $region20: #{effnet_ori_forward.2} parent=11 // pred_fallthru
        _
      // Predicated region
      $region21: #{effnet_ori_forward.2} parent=11 // pred_check
        %p182 = pneg %p114
      $region22: #{effnet_ori_forward.2} parent=11 // pred_check_branch
        %184 = sbr.rel (%p182) target = $region24
      $region23: #{effnet_ori_forward.2} parent=11 // pred_region
        _
      $region24: #{effnet_ori_forward.2} parent=11 // pred_fallthru
        _
      // Predicated region
      $region25: #{effnet_ori_forward.2} parent=11 // pred_check
        %p185 = pneg %p135
      $region26: #{effnet_ori_forward.2} parent=11 // pred_check_branch
        %187 = sbr.rel (%p185) target = $region28
      $region27: #{effnet_ori_forward.2} parent=11 // pred_region
        _
      $region28: #{effnet_ori_forward.2} parent=11 // pred_fallthru
        _
    $region12: #{effnet_ori_forward.2} parent=5 // pred_fallthru
      _
    %p188 = scmp.lt.s32.totalorder %s11, 2
    // Predicated region
    $region29: #{effnet_ori_forward.2} parent=5 // pred_check
      %p189 = pneg %p188
    $region30: #{effnet_ori_forward.2} parent=5 // pred_check_branch
      %191 = sbr.rel (%p189) target = $region32
    $region31: #{effnet_ori_forward.2} parent=5 // pred_region
      // Predicated region
      $region33: #{effnet_ori_forward.2} parent=31 // pred_check
        %p192 = pneg %p45
      $region34: #{effnet_ori_forward.2} parent=31 // pred_check_branch
        %194 = sbr.rel (%p192) target = $region36
      $region35: #{effnet_ori_forward.2} parent=31 // pred_region
        %p195 = scmp.lt.s32.totalorder %s18, 1
        %s196 = scalar_select %p195, %s18, 1
        %p197 = scmp.lt.s32.totalorder %s19, 0
        %s198 = scalar_select %p197, %s19, 0
        %s199 = smul.addr %s196, 2
        %s200 = sadd.s32 %s198, %s199
        %s201 = smul.addr %s200, 4
        %s202 = scalar_lea.vmem %s0, %s201
      $region36: #{effnet_ori_forward.2} parent=31 // pred_fallthru
        _
    $region32: #{effnet_ori_forward.2} parent=5 // pred_fallthru
      _
    %p203 = scmp.le.s32.totalorder 1, %s11
    %p204 = scmp.lt.s32.totalorder %s11, 3
    %p205 = pnand %p203, %p204
    %p206 = pneg %p205
    // Predicated region
    $region37: #{effnet_ori_forward.2} parent=5 // pred_check
      _
    $region38: #{effnet_ori_forward.2} parent=5 // pred_check_branch
      %208 = sbr.rel (%p205) target = $region40
    $region39: #{effnet_ori_forward.2} parent=5 // pred_region
      %s209 = ssub.s32 %s11, 1
      %p210 = scmp.lt.s32.totalorder %s20, 1
      %s211 = scalar_select %p210, %s20, 1
      %p212 = scmp.lt.s32.totalorder %s21, 0
      %s213 = scalar_select %p212, %s21, 0
      %s214 = smul.addr %s211, 2
      %s215 = sadd.s32 %s213, %s214
      %s216 = smul.addr %s215, 4
      %s217 = scalar_lea.vmem %s0, %s216
      %p218 = pneg %p51
      %p219 = pneg %p48
      %p220 = pneg %p72
      %p221 = pneg %p69
      %p222 = pneg %p93
      %p223 = pneg %p90
      %p224 = pneg %p114
      %p225 = pneg %p111
      %p226 = pneg %p135
      %p227 = pneg %p132
      %p228 = pneg %p161
      %p229 = pneg %p158
      %p230 = scmp.lt.s32.totalorder %s20, 1
      %s231 = scalar_select %p230, %s20, 1
      %s232 = smul.addr %s231, 16
      %s233 = smul.addr %s232, 8
      %s234 = scalar_lea.vmem %s5, %s233
      %p235 = scmp.lt.s32.totalorder %s20, 1
      %s236 = scalar_select %p235, %s20, 1
      %p237 = scmp.lt.s32.totalorder %s21, 0
      %s238 = scalar_select %p237, %s21, 0
      %s239 = smul.addr %s236, 2
      %s240 = sadd.s32 %s238, %s239
      %s241 = smul.addr %s240, 4
      %s242 = scalar_lea.vmem %s0, %s241
      %p243 = scmp.lt.s32.totalorder %s20, 1
      %s244 = scalar_select %p243, %s20, 1
      %s245 = smul.addr %s244, 16
      %s246 = smul.addr %s245, 8
      %s247 = scalar_lea.vmem %s5, %s246
      %p249 = scmp.eq.s32.totalorder %s21, 0
      // Predicated region
      $region41: #{effnet_ori_forward.2} parent=39 // pred_check
        %p250 = pneg %p249
      $region42: #{effnet_ori_forward.2} parent=39 // pred_check_branch
        %252 = sbr.rel (%p250) target = $region44
      $region43: #{effnet_ori_forward.2} parent=39 // pred_region
        %253 = vst [vmem:[#allocation2] sm:$0xff] 0.0
        %254 = vst [vmem:[#allocation2 + $0x8] sm:$0xff] 0.0
        %255 = vst [vmem:[#allocation2 + $0x10] sm:$0xff] 0.0
        %256 = vst [vmem:[#allocation2 + $0x18] sm:$0xff] 0.0
        %257 = vst [vmem:[#allocation2 + $0x20] sm:$0xff] 0.0
        %258 = vst [vmem:[#allocation2 + $0x28] sm:$0xff] 0.0
        %259 = vst [vmem:[#allocation2 + $0x30] sm:$0xff] 0.0
        %260 = vst [vmem:[#allocation2 + $0x38] sm:$0xff] 0.0
        %261 = vst [vmem:[#allocation2 + $0x40] sm:$0xff] 0.0
        %262 = vst [vmem:[#allocation2 + $0x48] sm:$0xff] 0.0
        %263 = vst [vmem:[#allocation2 + $0x50] sm:$0xff] 0.0
        %264 = vst [vmem:[#allocation2 + $0x58] sm:$0xff] 0.0
        %265 = vst [vmem:[#allocation2 + $0x60] sm:$0xff] 0.0
        %266 = vst [vmem:[#allocation2 + $0x68] sm:$0xff] 0.0
        %267 = vst [vmem:[#allocation2 + $0x70] sm:$0xff] 0.0
        %268 = vst [vmem:[#allocation2 + $0x78] sm:$0xff] 0.0
      $region44: #{effnet_ori_forward.2} parent=39 // pred_fallthru
        _
      %v269 = vld [vmem:[%s1] sm:$0xff]
      %v270 = vld [vmem:[%s1 + $0x8] sm:$0xff]
      %v271 = vld [vmem:[%s1 + $0x10] sm:$0xff]
      %v272 = vld [vmem:[%s1 + $0x18] sm:$0xff]
      %v273 = vld [vmem:[%s2] sm:$0xff]
      %v274 = vld [vmem:[%s2 + $0x8] sm:$0xff]
      %v275 = vld [vmem:[%s2 + $0x10] sm:$0xff]
      %v276 = vld [vmem:[%s2 + $0x18] sm:$0xff]
      %v277 = vld [vmem:[%s3] sm:$0xf]
      %v278 = vld [vmem:[%s3 + $0x4] sm:$0xf]
      %v279 = vld [vmem:[%s3 + $0x8] sm:$0xf]
      %v280 = vld [vmem:[%s3 + $0xc] sm:$0xf]
      %v281 = vld [vmem:[%s3 + $0x10] sm:$0xf]
      %v282 = vld [vmem:[%s3 + $0x14] sm:$0xf]
      %v283 = vld [vmem:[%s3 + $0x18] sm:$0xf]
      %v284 = vld [vmem:[%s3 + $0x1c] sm:$0xf]
      %v285 = vld [vmem:[%s3 + $0x20] sm:$0xf]
      %v286 = vld [vmem:[%s3 + $0x24] sm:$0xf]
      %v287 = vld [vmem:[%s3 + $0x28] sm:$0xf]
      %v288 = vld [vmem:[%s3 + $0x2c] sm:$0xf]
      %v289 = vld [vmem:[%s3 + $0x30] sm:$0xf]
      %v290 = vld [vmem:[%s3 + $0x34] sm:$0xf]
      %v291 = vld [vmem:[%s3 + $0x38] sm:$0xf]
      %v292 = vld [vmem:[%s3 + $0x3c] sm:$0xf]
      %v293 = vld [vmem:[%s242] sm:$0xf]
      %v294 = vld [vmem:[%s242 + $0x4] sm:$0x1]
      %v295 = vunpack.c.l.bf16 %v293
      %v296 = vunpack.c.l.bf16 %v294
      %298 = vset.pattern.permute.xlu0 0
      %299 = vperm.xlu0 %298, %v269
      %v300 = vpop.permute.xlu0 %299
      %303 = vset.pattern.permute.xlu0 0
      %304 = vperm.xlu0 %303, %v270
      %v305 = vpop.permute.xlu0 %304
      %308 = vset.pattern.permute.xlu0 0
      %309 = vperm.xlu0 %308, %v271
      %v310 = vpop.permute.xlu0 %309
      %313 = vset.pattern.permute.xlu0 0
      %314 = vperm.xlu0 %313, %v272
      %v315 = vpop.permute.xlu0 %314
      %v317 = vlaneseq
      %v318 = vshrl.u32 %v317, 7
      %v319 = vsub.s32 0, %v318
      %v320 = vrot.slane %v295, %v319
      %v321 = vmul.f32 %v300, %v320
      %v322 = vmul.f32 %v305, %v320
      %v323 = vmul.f32 %v310, %v320
      %v324 = vmul.f32 %v315, %v320
      %326 = vset.pattern.permute.xlu0 0
      %327 = vperm.xlu0 %326, %v273
      %v328 = vpop.permute.xlu0 %327
      %331 = vset.pattern.permute.xlu0 0
      %332 = vperm.xlu0 %331, %v274
      %v333 = vpop.permute.xlu0 %332
      %336 = vset.pattern.permute.xlu0 0
      %337 = vperm.xlu0 %336, %v275
      %v338 = vpop.permute.xlu0 %337
      %341 = vset.pattern.permute.xlu0 0
      %342 = vperm.xlu0 %341, %v276
      %v343 = vpop.permute.xlu0 %342
      %v345 = vadd.f32 %v328, %v321
      %v346 = vadd.f32 %v333, %v322
      %v347 = vadd.f32 %v338, %v323
      %v348 = vadd.f32 %v343, %v324
      %349 = vset.pattern.permute.xlu0 1
      %350 = vperm.xlu0 %349, %v269
      %v351 = vpop.permute.xlu0 %350
      %353 = vset.pattern.permute.xlu0 1
      %354 = vperm.xlu0 %353, %v270
      %v355 = vpop.permute.xlu0 %354
      %357 = vset.pattern.permute.xlu0 1
      %358 = vperm.xlu0 %357, %v271
      %v359 = vpop.permute.xlu0 %358
      %361 = vset.pattern.permute.xlu0 1
      %362 = vperm.xlu0 %361, %v272
      %v363 = vpop.permute.xlu0 %362
      %v365 = vlaneseq
      %v366 = vshrl.u32 %v365, 7
      %v367 = vsub.s32 1, %v366
      %v368 = vrot.slane %v295, %v367
      %v369 = vmul.f32 %v351, %v368
      %v370 = vmul.f32 %v355, %v368
      %v371 = vmul.f32 %v359, %v368
      %v372 = vmul.f32 %v363, %v368
      %v373 = vadd.f32 %v345, %v369
      %v374 = vadd.f32 %v346, %v370
      %v375 = vadd.f32 %v347, %v371
      %v376 = vadd.f32 %v348, %v372
      %377 = vset.pattern.permute.xlu0 2
      %378 = vperm.xlu0 %377, %v269
      %v379 = vpop.permute.xlu0 %378
      %381 = vset.pattern.permute.xlu0 2
      %382 = vperm.xlu0 %381, %v270
      %v383 = vpop.permute.xlu0 %382
      %385 = vset.pattern.permute.xlu0 2
      %386 = vperm.xlu0 %385, %v271
      %v387 = vpop.permute.xlu0 %386
      %389 = vset.pattern.permute.xlu0 2
      %390 = vperm.xlu0 %389, %v272
      %v391 = vpop.permute.xlu0 %390
      %v393 = vlaneseq
      %v394 = vshrl.u32 %v393, 7
      %v395 = vsub.s32 2, %v394
      %v396 = vrot.slane %v295, %v395
      %v397 = vmul.f32 %v379, %v396
      %v398 = vmul.f32 %v383, %v396
      %v399 = vmul.f32 %v387, %v396
      %v400 = vmul.f32 %v391, %v396
      %v401 = vadd.f32 %v373, %v397
      %v402 = vadd.f32 %v374, %v398
      %v403 = vadd.f32 %v375, %v399
      %v404 = vadd.f32 %v376, %v400
      %405 = vset.pattern.permute.xlu0 3
      %406 = vperm.xlu0 %405, %v269
      %v407 = vpop.permute.xlu0 %406
      %409 = vset.pattern.permute.xlu0 3
      %410 = vperm.xlu0 %409, %v270
      %v411 = vpop.permute.xlu0 %410
      %413 = vset.pattern.permute.xlu0 3
      %414 = vperm.xlu0 %413, %v271
      %v415 = vpop.permute.xlu0 %414
      %417 = vset.pattern.permute.xlu0 3
      %418 = vperm.xlu0 %417, %v272
      %v419 = vpop.permute.xlu0 %418
      %v421 = vlaneseq
      %v422 = vshrl.u32 %v421, 7
      %v423 = vsub.s32 3, %v422
      %v424 = vrot.slane %v295, %v423
      %v425 = vmul.f32 %v407, %v424
      %v426 = vmul.f32 %v411, %v424
      %v427 = vmul.f32 %v415, %v424
      %v428 = vmul.f32 %v419, %v424
      %v429 = vadd.f32 %v401, %v425
      %v430 = vadd.f32 %v402, %v426
      %v431 = vadd.f32 %v403, %v427
      %v432 = vadd.f32 %v404, %v428
      %433 = vset.pattern.permute.xlu0 4
      %434 = vperm.xlu0 %433, %v269
      %v435 = vpop.permute.xlu0 %434
      %437 = vset.pattern.permute.xlu0 4
      %438 = vperm.xlu0 %437, %v270
      %v439 = vpop.permute.xlu0 %438
      %441 = vset.pattern.permute.xlu0 4
      %442 = vperm.xlu0 %441, %v271
      %v443 = vpop.permute.xlu0 %442
      %445 = vset.pattern.permute.xlu0 4
      %446 = vperm.xlu0 %445, %v272
      %v447 = vpop.permute.xlu0 %446
      %v449 = vlaneseq
      %v450 = vshrl.u32 %v449, 7
      %v451 = vsub.s32 4, %v450
      %v452 = vrot.slane %v295, %v451
      %v453 = vmul.f32 %v435, %v452
      %v454 = vmul.f32 %v439, %v452
      %v455 = vmul.f32 %v443, %v452
      %v456 = vmul.f32 %v447, %v452
      %v457 = vadd.f32 %v429, %v453
      %v458 = vadd.f32 %v430, %v454
      %v459 = vadd.f32 %v431, %v455
      %v460 = vadd.f32 %v432, %v456
      %461 = vset.pattern.permute.xlu0 5
      %462 = vperm.xlu0 %461, %v269
      %v463 = vpop.permute.xlu0 %462
      %465 = vset.pattern.permute.xlu0 5
      %466 = vperm.xlu0 %465, %v270
      %v467 = vpop.permute.xlu0 %466
      %469 = vset.pattern.permute.xlu0 5
      %470 = vperm.xlu0 %469, %v271
      %v471 = vpop.permute.xlu0 %470
      %473 = vset.pattern.permute.xlu0 5
      %474 = vperm.xlu0 %473, %v272
      %v475 = vpop.permute.xlu0 %474
      %v477 = vlaneseq
      %v478 = vshrl.u32 %v477, 7
      %v479 = vsub.s32 5, %v478
      %v480 = vrot.slane %v295, %v479
      %v481 = vmul.f32 %v463, %v480
      %v482 = vmul.f32 %v467, %v480
      %v483 = vmul.f32 %v471, %v480
      %v484 = vmul.f32 %v475, %v480
      %v485 = vadd.f32 %v457, %v481
      %v486 = vadd.f32 %v458, %v482
      %v487 = vadd.f32 %v459, %v483
      %v488 = vadd.f32 %v460, %v484
      %489 = vset.pattern.permute.xlu0 6
      %490 = vperm.xlu0 %489, %v269
      %v491 = vpop.permute.xlu0 %490
      %493 = vset.pattern.permute.xlu0 6
      %494 = vperm.xlu0 %493, %v270
      %v495 = vpop.permute.xlu0 %494
      %497 = vset.pattern.permute.xlu0 6
      %498 = vperm.xlu0 %497, %v271
      %v499 = vpop.permute.xlu0 %498
      %501 = vset.pattern.permute.xlu0 6
      %502 = vperm.xlu0 %501, %v272
      %v503 = vpop.permute.xlu0 %502
      %v505 = vlaneseq
      %v506 = vshrl.u32 %v505, 7
      %v507 = vsub.s32 6, %v506
      %v508 = vrot.slane %v295, %v507
      %v509 = vmul.f32 %v491, %v508
      %v510 = vmul.f32 %v495, %v508
      %v511 = vmul.f32 %v499, %v508
      %v512 = vmul.f32 %v503, %v508
      %v513 = vadd.f32 %v485, %v509
      %v514 = vadd.f32 %v486, %v510
      %v515 = vadd.f32 %v487, %v511
      %v516 = vadd.f32 %v488, %v512
      %517 = vset.pattern.permute.xlu0 7
      %518 = vperm.xlu0 %517, %v269
      %v519 = vpop.permute.xlu0 %518
      %521 = vset.pattern.permute.xlu0 7
      %522 = vperm.xlu0 %521, %v270
      %v523 = vpop.permute.xlu0 %522
      %525 = vset.pattern.permute.xlu0 7
      %526 = vperm.xlu0 %525, %v271
      %v527 = vpop.permute.xlu0 %526
      %529 = vset.pattern.permute.xlu0 7
      %530 = vperm.xlu0 %529, %v272
      %v531 = vpop.permute.xlu0 %530
      %v533 = vlaneseq
      %v534 = vshrl.u32 %v533, 7
      %v535 = vsub.s32 7, %v534
      %v536 = vrot.slane %v295, %v535
      %v537 = vmul.f32 %v519, %v536
      %v538 = vmul.f32 %v523, %v536
      %v539 = vmul.f32 %v527, %v536
      %v540 = vmul.f32 %v531, %v536
      %v541 = vadd.f32 %v513, %v537
      %v542 = vadd.f32 %v514, %v538
      %v543 = vadd.f32 %v515, %v539
      %v544 = vadd.f32 %v516, %v540
      %545 = vset.pattern.permute.xlu0 8
      %546 = vperm.xlu0 %545, %v269
      %v547 = vpop.permute.xlu0 %546
      %549 = vset.pattern.permute.xlu0 8
      %550 = vperm.xlu0 %549, %v270
      %v551 = vpop.permute.xlu0 %550
      %553 = vset.pattern.permute.xlu0 8
      %554 = vperm.xlu0 %553, %v271
      %v555 = vpop.permute.xlu0 %554
      %557 = vset.pattern.permute.xlu0 8
      %558 = vperm.xlu0 %557, %v272
      %v559 = vpop.permute.xlu0 %558
      %v561 = vlaneseq
      %v562 = vshrl.u32 %v561, 7
      %v563 = vsub.s32 0, %v562
      %v564 = vrot.slane %v296, %v563
      %v565 = vmul.f32 %v547, %v564
      %v566 = vmul.f32 %v551, %v564
      %v567 = vmul.f32 %v555, %v564
      %v568 = vmul.f32 %v559, %v564
      %v569 = vadd.f32 %v541, %v565
      %v570 = vadd.f32 %v542, %v566
      %v571 = vadd.f32 %v543, %v567
      %v572 = vadd.f32 %v544, %v568
      %v573 = vxor.u32 %v569, 2147483648
      %v574 = vxor.u32 %v570, 2147483648
      %v575 = vxor.u32 %v571, 2147483648
      %v576 = vxor.u32 %v572, 2147483648
      %v577 = vmul.f32 %v573, 1.442695
      %v578 = vpow.pop %v577
      %v579 = vmul.f32 %v574, 1.442695
      %v580 = vpow.pop %v579
      %v581 = vmul.f32 %v575, 1.442695
      %v582 = vpow.pop %v581
      %v583 = vmul.f32 %v576, 1.442695
      %v584 = vpow.pop %v583
      %v585 = vadd.f32 %v578, 1.0
      %v586 = vadd.f32 %v580, 1.0
      %v587 = vadd.f32 %v582, 1.0
      %v588 = vadd.f32 %v584, 1.0
      %v589 = vrcp.pop %v585
      %v590 = vmul.f32 1.0, %v589
      %v591 = vrcp.pop %v586
      %v592 = vmul.f32 1.0, %v591
      %v593 = vrcp.pop %v587
      %v594 = vmul.f32 1.0, %v593
      %v595 = vrcp.pop %v588
      %v596 = vmul.f32 1.0, %v595
      %v597 = vmul.f32 %v569, %v590
      %v598 = vmul.f32 %v570, %v592
      %v599 = vmul.f32 %v571, %v594
      %v600 = vmul.f32 %v572, %v596
      %v601 = vpack.c.bf16 %v598, %v597
      %v602 = vpack.c.bf16 %v600, %v599
      %v603 = vld [vmem:[%s4] sm:$0xff]
      %v604 = vld [vmem:[%s4 + $0x8] sm:$0xff]
      %v605 = vld [vmem:[%s4 + $0x10] sm:$0xff]
      %v606 = vld [vmem:[%s4 + $0x18] sm:$0xff]
      %v607 = vld [vmem:[%s4 + $0x20] sm:$0xff]
      %v608 = vld [vmem:[%s4 + $0x28] sm:$0xff]
      %v609 = vld [vmem:[%s4 + $0x30] sm:$0xff]
      %v610 = vld [vmem:[%s4 + $0x38] sm:$0xff]
      %v611 = vld [vmem:[%s4 + $0x40] sm:$0xff]
      %v612 = vld [vmem:[%s4 + $0x48] sm:$0xff]
      %v613 = vld [vmem:[%s4 + $0x50] sm:$0xff]
      %v614 = vld [vmem:[%s4 + $0x58] sm:$0xff]
      %v615 = vld [vmem:[%s4 + $0x60] sm:$0xff]
      %v616 = vld [vmem:[%s4 + $0x68] sm:$0xff]
      %v617 = vld [vmem:[%s4 + $0x70] sm:$0xff]
      %v618 = vld [vmem:[%s4 + $0x78] sm:$0xff]
      %v635 = vunpack.c.l.b16 %v277
      %v636 = vunpack.c.l.b16 %v278
      %v637 = vunpack.c.l.b16 %v279
      %v638 = vunpack.c.l.b16 %v280
      %v639 = vunpack.c.l.b16 %v281
      %v640 = vunpack.c.l.b16 %v282
      %v641 = vunpack.c.l.b16 %v283
      %v642 = vunpack.c.l.b16 %v284
      %v643 = vunpack.c.l.b16 %v285
      %v644 = vunpack.c.l.b16 %v286
      %v645 = vunpack.c.l.b16 %v287
      %v646 = vunpack.c.l.b16 %v288
      %v647 = vunpack.c.l.b16 %v289
      %v648 = vunpack.c.l.b16 %v290
      %v649 = vunpack.c.l.b16 %v291
      %v650 = vunpack.c.l.b16 %v292
      %v651 = vpack.c.b16 %v636, %v635
      %v652 = vpack.c.b16 %v638, %v637
      %v653 = vpack.c.b16 %v640, %v639
      %v654 = vpack.c.b16 %v642, %v641
      %v655 = vpack.c.b16 %v644, %v643
      %v656 = vpack.c.b16 %v646, %v645
      %v657 = vpack.c.b16 %v648, %v647
      %v658 = vpack.c.b16 %v650, %v649
      %vm659 = vcmask 261120
      %v661 = vsel %vm659, %v651, 0
      %v664 = vsel %vm659, %v652, 0
      %v667 = vsel %vm659, %v653, 0
      %v670 = vsel %vm659, %v654, 0
      %v673 = vsel %vm659, %v655, 0
      %v676 = vsel %vm659, %v656, 0
      %v679 = vsel %vm659, %v657, 0
      %v682 = vsel %vm659, %v658, 0
      %684 = vmatprep.subr.bf16.mxu0 0
      %685 = vmatpush1.bf16.msra.mxu0 0
      %686 = vmatprep.subr.bf16.mxu0 0
      %687 = vmatpush1.bf16.msra.mxu0 0
      %688 = vmatprep.subr.bf16.mxu0 0
      %689 = vmatpush1.bf16.msra.mxu0 0
      %690 = vmatprep.subr.bf16.mxu0 0
      %691 = vmatpush1.bf16.msra.mxu0 0
      %692 = vmatprep.subr.bf16.mxu0 0
      %693 = vmatpush1.bf16.msra.mxu0 0
      %694 = vmatprep.subr.bf16.mxu0 0
      %695 = vmatpush1.bf16.msra.mxu0 0
      %696 = vmatprep.subr.bf16.mxu0 0
      %697 = vmatpush1.bf16.msra.mxu0 %v602
      %698 = vmatprep.subr.bf16.mxu0 0
      %699 = vmatpush1.bf16.msra.mxu0 %v601
      %700 = vmatprep.subr.bf16.mxu0 0
      %701 = vmatpush2.bf16.msra.mxu0 0
      %702 = vmatprep.subr.bf16.mxu0 0
      %703 = vmatpush2.bf16.msra.mxu0 0
      %704 = vmatprep.subr.bf16.mxu0 0
      %705 = vmatpush2.bf16.msra.mxu0 0
      %706 = vmatprep.subr.bf16.mxu0 0
      %707 = vmatpush2.bf16.msra.mxu0 0
      %708 = vmatprep.subr.bf16.mxu0 0
      %709 = vmatpush2.bf16.msra.mxu0 0
      %710 = vmatprep.subr.bf16.mxu0 0
      %711 = vmatpush2.bf16.msra.mxu0 0
      %712 = vmatprep.subr.bf16.mxu0 0
      %713 = vmatpush2.bf16.msra.mxu0 0
      %714 = vmatprep.subr.bf16.mxu0 0
      %715 = vmatpush2.bf16.msra.mxu0 0
      %716 = vmatprep.mubr.bf16.mxu0 0
      %717 = vmatmul.mubr.bf16.gmra.mxu0 %v661
      %v718 = vpop.f32.mrf.mxu0
      %v719 = vadd.f32 %v603, %v718
      %v720 = vpop.f32.mrf.mxu0
      %v721 = vpop.f32.mrf.mxu0
      %v722 = vadd.f32 %v604, %v721
      %v723 = vpop.f32.mrf.mxu0
      %724 = vmatprep.mubr.bf16.mxu0 0
      %725 = vmatmul.mubr.bf16.gmra.mxu0 %v664
      %v726 = vpop.f32.mrf.mxu0
      %v727 = vadd.f32 %v605, %v726
      %v728 = vpop.f32.mrf.mxu0
      %v729 = vpop.f32.mrf.mxu0
      %v730 = vadd.f32 %v606, %v729
      %v731 = vpop.f32.mrf.mxu0
      %732 = vmatprep.mubr.bf16.mxu0 0
      %733 = vmatmul.mubr.bf16.gmra.mxu0 %v667
      %v734 = vpop.f32.mrf.mxu0
      %v735 = vadd.f32 %v607, %v734
      %v736 = vpop.f32.mrf.mxu0
      %v737 = vpop.f32.mrf.mxu0
      %v738 = vadd.f32 %v608, %v737
      %v739 = vpop.f32.mrf.mxu0
      %740 = vmatprep.mubr.bf16.mxu0 0
      %741 = vmatmul.mubr.bf16.gmra.mxu0 %v670
      %v742 = vpop.f32.mrf.mxu0
      %v743 = vadd.f32 %v609, %v742
      %v744 = vpop.f32.mrf.mxu0
      %v745 = vpop.f32.mrf.mxu0
      %v746 = vadd.f32 %v610, %v745
      %v747 = vpop.f32.mrf.mxu0
      %748 = vmatprep.mubr.bf16.mxu0 0
      %749 = vmatmul.mubr.bf16.gmra.mxu0 %v673
      %v750 = vpop.f32.mrf.mxu0
      %v751 = vadd.f32 %v611, %v750
      %v752 = vpop.f32.mrf.mxu0
      %v753 = vpop.f32.mrf.mxu0
      %v754 = vadd.f32 %v612, %v753
      %v755 = vpop.f32.mrf.mxu0
      %756 = vmatprep.mubr.bf16.mxu0 0
      %757 = vmatmul.mubr.bf16.gmra.mxu0 %v676
      %v758 = vpop.f32.mrf.mxu0
      %v759 = vadd.f32 %v613, %v758
      %v760 = vpop.f32.mrf.mxu0
      %v761 = vpop.f32.mrf.mxu0
      %v762 = vadd.f32 %v614, %v761
      %v763 = vpop.f32.mrf.mxu0
      %764 = vmatprep.mubr.bf16.mxu0 0
      %765 = vmatmul.mubr.bf16.gmra.mxu0 %v679
      %v766 = vpop.f32.mrf.mxu0
      %v767 = vadd.f32 %v615, %v766
      %v768 = vpop.f32.mrf.mxu0
      %v769 = vpop.f32.mrf.mxu0
      %v770 = vadd.f32 %v616, %v769
      %v771 = vpop.f32.mrf.mxu0
      %772 = vmatprep.mubr.bf16.mxu0 0
      %773 = vmatmul.mubr.bf16.gmra.mxu0 %v682
      %v774 = vpop.f32.mrf.mxu0
      %v775 = vadd.f32 %v617, %v774
      %v776 = vpop.f32.mrf.mxu0
      %v777 = vpop.f32.mrf.mxu0
      %v778 = vadd.f32 %v618, %v777
      %v779 = vpop.f32.mrf.mxu0
      %780 = vdwg.mxu0
      %v781 = vxor.u32 %v719, 2147483648
      %v782 = vxor.u32 %v722, 2147483648
      %v783 = vxor.u32 %v727, 2147483648
      %v784 = vxor.u32 %v730, 2147483648
      %v785 = vxor.u32 %v735, 2147483648
      %v786 = vxor.u32 %v738, 2147483648
      %v787 = vxor.u32 %v743, 2147483648
      %v788 = vxor.u32 %v746, 2147483648
      %v789 = vxor.u32 %v751, 2147483648
      %v790 = vxor.u32 %v754, 2147483648
      %v791 = vxor.u32 %v759, 2147483648
      %v792 = vxor.u32 %v762, 2147483648
      %v793 = vxor.u32 %v767, 2147483648
      %v794 = vxor.u32 %v770, 2147483648
      %v795 = vxor.u32 %v775, 2147483648
      %v796 = vxor.u32 %v778, 2147483648
      %v797 = vmul.f32 %v781, 1.442695
      %v798 = vpow.pop %v797
      %v799 = vmul.f32 %v782, 1.442695
      %v800 = vpow.pop %v799
      %v801 = vmul.f32 %v783, 1.442695
      %v802 = vpow.pop %v801
      %v803 = vmul.f32 %v784, 1.442695
      %v804 = vpow.pop %v803
      %v805 = vmul.f32 %v785, 1.442695
      %v806 = vpow.pop %v805
      %v807 = vmul.f32 %v786, 1.442695
      %v808 = vpow.pop %v807
      %v809 = vmul.f32 %v787, 1.442695
      %v810 = vpow.pop %v809
      %v811 = vmul.f32 %v788, 1.442695
      %v812 = vpow.pop %v811
      %v813 = vmul.f32 %v789, 1.442695
      %v814 = vpow.pop %v813
      %v815 = vmul.f32 %v790, 1.442695
      %v816 = vpow.pop %v815
      %v817 = vmul.f32 %v791, 1.442695
      %v818 = vpow.pop %v817
      %v819 = vmul.f32 %v792, 1.442695
      %v820 = vpow.pop %v819
      %v821 = vmul.f32 %v793, 1.442695
      %v822 = vpow.pop %v821
      %v823 = vmul.f32 %v794, 1.442695
      %v824 = vpow.pop %v823
      %v825 = vmul.f32 %v795, 1.442695
      %v826 = vpow.pop %v825
      %v827 = vmul.f32 %v796, 1.442695
      %v828 = vpow.pop %v827
      %v829 = vadd.f32 %v798, 1.0
      %v830 = vadd.f32 %v800, 1.0
      %v831 = vadd.f32 %v802, 1.0
      %v832 = vadd.f32 %v804, 1.0
      %v833 = vadd.f32 %v806, 1.0
      %v834 = vadd.f32 %v808, 1.0
      %v835 = vadd.f32 %v810, 1.0
      %v836 = vadd.f32 %v812, 1.0
      %v837 = vadd.f32 %v814, 1.0
      %v838 = vadd.f32 %v816, 1.0
      %v839 = vadd.f32 %v818, 1.0
      %v840 = vadd.f32 %v820, 1.0
      %v841 = vadd.f32 %v822, 1.0
      %v842 = vadd.f32 %v824, 1.0
      %v843 = vadd.f32 %v826, 1.0
      %v844 = vadd.f32 %v828, 1.0
      %v845 = vrcp.pop %v829
      %v846 = vmul.f32 1.0, %v845
      %v847 = vrcp.pop %v830
      %v848 = vmul.f32 1.0, %v847
      %v849 = vrcp.pop %v831
      %v850 = vmul.f32 1.0, %v849
      %v851 = vrcp.pop %v832
      %v852 = vmul.f32 1.0, %v851
      %v853 = vrcp.pop %v833
      %v854 = vmul.f32 1.0, %v853
      %v855 = vrcp.pop %v834
      %v856 = vmul.f32 1.0, %v855
      %v857 = vrcp.pop %v835
      %v858 = vmul.f32 1.0, %v857
      %v859 = vrcp.pop %v836
      %v860 = vmul.f32 1.0, %v859
      %v861 = vrcp.pop %v837
      %v862 = vmul.f32 1.0, %v861
      %v863 = vrcp.pop %v838
      %v864 = vmul.f32 1.0, %v863
      %v865 = vrcp.pop %v839
      %v866 = vmul.f32 1.0, %v865
      %v867 = vrcp.pop %v840
      %v868 = vmul.f32 1.0, %v867
      %v869 = vrcp.pop %v841
      %v870 = vmul.f32 1.0, %v869
      %v871 = vrcp.pop %v842
      %v872 = vmul.f32 1.0, %v871
      %v873 = vrcp.pop %v843
      %v874 = vmul.f32 1.0, %v873
      %v875 = vrcp.pop %v844
      %v876 = vmul.f32 1.0, %v875
      %v877 = vmul.f32 %v719, %v846
      %v878 = vmul.f32 %v722, %v848
      %v879 = vmul.f32 %v727, %v850
      %v880 = vmul.f32 %v730, %v852
      %v881 = vmul.f32 %v735, %v854
      %v882 = vmul.f32 %v738, %v856
      %v883 = vmul.f32 %v743, %v858
      %v884 = vmul.f32 %v746, %v860
      %v885 = vmul.f32 %v751, %v862
      %v886 = vmul.f32 %v754, %v864
      %v887 = vmul.f32 %v759, %v866
      %v888 = vmul.f32 %v762, %v868
      %v889 = vmul.f32 %v767, %v870
      %v890 = vmul.f32 %v770, %v872
      %v891 = vmul.f32 %v775, %v874
      %v892 = vmul.f32 %v778, %v876
      %v893 = vlaneseq
      %v894 = vand.u32 %v893, 127
      %s895 = smul.u32 %s21, 128
      %s896 = sadd.s32 %s895, 0
      %v897 = vstv %s896
      %v898 = vadd.s32 %v894, %v897
      %vm899 = vcmp.lt.s32.totalorder %v898, 64
      %v900 = vsel %vm899, 1, 0
      %vm901 = vcmp.eq.s32.totalorder %v900, 1
      %v902 = vsel %vm901, %v877, 0.0
      %v903 = vsel %vm901, %v878, 0.0
      %v904 = vsel %vm901, %v879, 0.0
      %v905 = vsel %vm901, %v880, 0.0
      %v906 = vsel %vm901, %v881, 0.0
      %v907 = vsel %vm901, %v882, 0.0
      %v908 = vsel %vm901, %v883, 0.0
      %v909 = vsel %vm901, %v884, 0.0
      %v910 = vsel %vm901, %v885, 0.0
      %v911 = vsel %vm901, %v886, 0.0
      %v912 = vsel %vm901, %v887, 0.0
      %v913 = vsel %vm901, %v888, 0.0
      %v914 = vsel %vm901, %v889, 0.0
      %v915 = vsel %vm901, %v890, 0.0
      %v916 = vsel %vm901, %v891, 0.0
      %v917 = vsel %vm901, %v892, 0.0
      %v918 = vadd.f32 %v902, 0.0
      %v919 = vadd.f32 %v903, 0.0
      %v920 = vadd.f32 %v904, 0.0
      %v921 = vadd.f32 %v905, 0.0
      %v922 = vadd.f32 %v906, 0.0
      %v923 = vadd.f32 %v907, 0.0
      %v924 = vadd.f32 %v908, 0.0
      %v925 = vadd.f32 %v909, 0.0
      %v926 = vadd.f32 %v910, 0.0
      %v927 = vadd.f32 %v911, 0.0
      %v928 = vadd.f32 %v912, 0.0
      %v929 = vadd.f32 %v913, 0.0
      %v930 = vadd.f32 %v914, 0.0
      %v931 = vadd.f32 %v915, 0.0
      %v932 = vadd.f32 %v916, 0.0
      %v933 = vadd.f32 %v917, 0.0
      %v934 = vld [vmem:[#allocation2] sm:$0xff]
      %v935 = vld [vmem:[#allocation2 + $0x8] sm:$0xff]
      %v936 = vld [vmem:[#allocation2 + $0x10] sm:$0xff]
      %v937 = vld [vmem:[#allocation2 + $0x18] sm:$0xff]
      %v938 = vld [vmem:[#allocation2 + $0x20] sm:$0xff]
      %v939 = vld [vmem:[#allocation2 + $0x28] sm:$0xff]
      %v940 = vld [vmem:[#allocation2 + $0x30] sm:$0xff]
      %v941 = vld [vmem:[#allocation2 + $0x38] sm:$0xff]
      %v942 = vld [vmem:[#allocation2 + $0x40] sm:$0xff]
      %v943 = vld [vmem:[#allocation2 + $0x48] sm:$0xff]
      %v944 = vld [vmem:[#allocation2 + $0x50] sm:$0xff]
      %v945 = vld [vmem:[#allocation2 + $0x58] sm:$0xff]
      %v946 = vld [vmem:[#allocation2 + $0x60] sm:$0xff]
      %v947 = vld [vmem:[#allocation2 + $0x68] sm:$0xff]
      %v948 = vld [vmem:[#allocation2 + $0x70] sm:$0xff]
      %v949 = vld [vmem:[#allocation2 + $0x78] sm:$0xff]
      %v950 = vadd.f32 %v934, %v918
      %v951 = vadd.f32 %v935, %v919
      %v952 = vadd.f32 %v936, %v920
      %v953 = vadd.f32 %v937, %v921
      %v954 = vadd.f32 %v938, %v922
      %v955 = vadd.f32 %v939, %v923
      %v956 = vadd.f32 %v940, %v924
      %v957 = vadd.f32 %v941, %v925
      %v958 = vadd.f32 %v942, %v926
      %v959 = vadd.f32 %v943, %v927
      %v960 = vadd.f32 %v944, %v928
      %v961 = vadd.f32 %v945, %v929
      %v962 = vadd.f32 %v946, %v930
      %v963 = vadd.f32 %v947, %v931
      %v964 = vadd.f32 %v948, %v932
      %v965 = vadd.f32 %v949, %v933
      %966 = vst [vmem:[#allocation2] sm:$0xff] %v950
      %967 = vst [vmem:[#allocation2 + $0x8] sm:$0xff] %v951
      %968 = vst [vmem:[#allocation2 + $0x10] sm:$0xff] %v952
      %969 = vst [vmem:[#allocation2 + $0x18] sm:$0xff] %v953
      %970 = vst [vmem:[#allocation2 + $0x20] sm:$0xff] %v954
      %971 = vst [vmem:[#allocation2 + $0x28] sm:$0xff] %v955
      %972 = vst [vmem:[#allocation2 + $0x30] sm:$0xff] %v956
      %973 = vst [vmem:[#allocation2 + $0x38] sm:$0xff] %v957
      %974 = vst [vmem:[#allocation2 + $0x40] sm:$0xff] %v958
      %975 = vst [vmem:[#allocation2 + $0x48] sm:$0xff] %v959
      %976 = vst [vmem:[#allocation2 + $0x50] sm:$0xff] %v960
      %977 = vst [vmem:[#allocation2 + $0x58] sm:$0xff] %v961
      %978 = vst [vmem:[#allocation2 + $0x60] sm:$0xff] %v962
      %979 = vst [vmem:[#allocation2 + $0x68] sm:$0xff] %v963
      %980 = vst [vmem:[#allocation2 + $0x70] sm:$0xff] %v964
      %981 = vst [vmem:[#allocation2 + $0x78] sm:$0xff] %v965
      // Predicated region
      $region45: #{effnet_ori_forward.2} parent=39 // pred_check
        %p982 = pneg %p249
      $region46: #{effnet_ori_forward.2} parent=39 // pred_check_branch
        %984 = sbr.rel (%p982) target = $region48
      $region47: #{effnet_ori_forward.2} parent=39 // pred_region
        %v985 = vld [vmem:[#allocation2] sm:$0xff]
        %v986 = vld [vmem:[#allocation2 + $0x8] sm:$0xff]
        %v987 = vld [vmem:[#allocation2 + $0x10] sm:$0xff]
        %v988 = vld [vmem:[#allocation2 + $0x18] sm:$0xff]
        %v989 = vld [vmem:[#allocation2 + $0x20] sm:$0xff]
        %v990 = vld [vmem:[#allocation2 + $0x28] sm:$0xff]
        %v991 = vld [vmem:[#allocation2 + $0x30] sm:$0xff]
        %v992 = vld [vmem:[#allocation2 + $0x38] sm:$0xff]
        %v993 = vld [vmem:[#allocation2 + $0x40] sm:$0xff]
        %v994 = vld [vmem:[#allocation2 + $0x48] sm:$0xff]
        %v995 = vld [vmem:[#allocation2 + $0x50] sm:$0xff]
        %v996 = vld [vmem:[#allocation2 + $0x58] sm:$0xff]
        %v997 = vld [vmem:[#allocation2 + $0x60] sm:$0xff]
        %v998 = vld [vmem:[#allocation2 + $0x68] sm:$0xff]
        %v999 = vld [vmem:[#allocation2 + $0x70] sm:$0xff]
        %v1000 = vld [vmem:[#allocation2 + $0x78] sm:$0xff]
        %1001 = vadd.xlane.f32.xlu0 %v985
        %v1002 = vpop.xlane.xlu0 %1001
        %1003 = vadd.xlane.f32.xlu0 %v986
        %v1004 = vpop.xlane.xlu0 %1003
        %1005 = vadd.xlane.f32.xlu0 %v987
        %v1006 = vpop.xlane.xlu0 %1005
        %1007 = vadd.xlane.f32.xlu0 %v988
        %v1008 = vpop.xlane.xlu0 %1007
        %1009 = vadd.xlane.f32.xlu0 %v989
        %v1010 = vpop.xlane.xlu0 %1009
        %1011 = vadd.xlane.f32.xlu0 %v990
        %v1012 = vpop.xlane.xlu0 %1011
        %1013 = vadd.xlane.f32.xlu0 %v991
        %v1014 = vpop.xlane.xlu0 %1013
        %1015 = vadd.xlane.f32.xlu0 %v992
        %v1016 = vpop.xlane.xlu0 %1015
        %1017 = vadd.xlane.f32.xlu0 %v993
        %v1018 = vpop.xlane.xlu0 %1017
        %1019 = vadd.xlane.f32.xlu0 %v994
        %v1020 = vpop.xlane.xlu0 %1019
        %1021 = vadd.xlane.f32.xlu0 %v995
        %v1022 = vpop.xlane.xlu0 %1021
        %1023 = vadd.xlane.f32.xlu0 %v996
        %v1024 = vpop.xlane.xlu0 %1023
        %1025 = vadd.xlane.f32.xlu0 %v997
        %v1026 = vpop.xlane.xlu0 %1025
        %1027 = vadd.xlane.f32.xlu0 %v998
        %v1028 = vpop.xlane.xlu0 %1027
        %1029 = vadd.xlane.f32.xlu0 %v999
        %v1030 = vpop.xlane.xlu0 %1029
        %1031 = vadd.xlane.f32.xlu0 %v1000
        %v1032 = vpop.xlane.xlu0 %1031
        %v1033 = vmul.f32 %v1002, 0.015625
        %v1034 = vmul.f32 %v1004, 0.015625
        %v1035 = vmul.f32 %v1006, 0.015625
        %v1036 = vmul.f32 %v1008, 0.015625
        %v1037 = vmul.f32 %v1010, 0.015625
        %v1038 = vmul.f32 %v1012, 0.015625
        %v1039 = vmul.f32 %v1014, 0.015625
        %v1040 = vmul.f32 %v1016, 0.015625
        %v1041 = vmul.f32 %v1018, 0.015625
        %v1042 = vmul.f32 %v1020, 0.015625
        %v1043 = vmul.f32 %v1022, 0.015625
        %v1044 = vmul.f32 %v1024, 0.015625
        %v1045 = vmul.f32 %v1026, 0.015625
        %v1046 = vmul.f32 %v1028, 0.015625
        %v1047 = vmul.f32 %v1030, 0.015625
        %v1048 = vmul.f32 %v1032, 0.015625
        %vm1049 = vcmask 7168
        %1050 = vst.msk [vmem:[%s247] sm:$0xff] %vm1049, %v1033
        %1051 = vst.msk [vmem:[%s247 + $0x8] sm:$0xff] %vm1049, %v1034
        %1052 = vst.msk [vmem:[%s247 + $0x10] sm:$0xff] %vm1049, %v1035
        %1053 = vst.msk [vmem:[%s247 + $0x18] sm:$0xff] %vm1049, %v1036
        %1054 = vst.msk [vmem:[%s247 + $0x20] sm:$0xff] %vm1049, %v1037
        %1055 = vst.msk [vmem:[%s247 + $0x28] sm:$0xff] %vm1049, %v1038
        %1056 = vst.msk [vmem:[%s247 + $0x30] sm:$0xff] %vm1049, %v1039
        %1057 = vst.msk [vmem:[%s247 + $0x38] sm:$0xff] %vm1049, %v1040
        %1058 = vst.msk [vmem:[%s247 + $0x40] sm:$0xff] %vm1049, %v1041
        %1059 = vst.msk [vmem:[%s247 + $0x48] sm:$0xff] %vm1049, %v1042
        %1060 = vst.msk [vmem:[%s247 + $0x50] sm:$0xff] %vm1049, %v1043
        %1061 = vst.msk [vmem:[%s247 + $0x58] sm:$0xff] %vm1049, %v1044
        %1062 = vst.msk [vmem:[%s247 + $0x60] sm:$0xff] %vm1049, %v1045
        %1063 = vst.msk [vmem:[%s247 + $0x68] sm:$0xff] %vm1049, %v1046
        %1064 = vst.msk [vmem:[%s247 + $0x70] sm:$0xff] %vm1049, %v1047
        %1065 = vst.msk [vmem:[%s247 + $0x78] sm:$0xff] %vm1049, %v1048
      $region48: #{effnet_ori_forward.2} parent=39 // pred_fallthru
        _
      %p1066 = scmp.lt.s32.totalorder %s20, 1
      %s1067 = scalar_select %p1066, %s20, 1
      %s1068 = smul.addr %s1067, 16
      %s1069 = smul.addr %s1068, 8
      %s1070 = scalar_lea.vmem %s5, %s1069
      // Predicated region
      $region49: #{effnet_ori_forward.2} parent=39 // pred_check
        %p1071 = pneg %p158
      $region50: #{effnet_ori_forward.2} parent=39 // pred_check_branch
        %1073 = sbr.rel (%p1071) target = $region52
      $region51: #{effnet_ori_forward.2} parent=39 // pred_region
        _
      $region52: #{effnet_ori_forward.2} parent=39 // pred_fallthru
        _
    $region40: #{effnet_ori_forward.2} parent=5 // pred_fallthru
      _
    %p1074 = scmp.le.s32.totalorder 2, %s11
    // Predicated region
    $region53: #{effnet_ori_forward.2} parent=5 // pred_check
      %p1075 = pneg %p1074
    $region54: #{effnet_ori_forward.2} parent=5 // pred_check_branch
      %1077 = sbr.rel (%p1075) target = $region56
    $region55: #{effnet_ori_forward.2} parent=5 // pred_region
      %s1078 = ssub.s32 %s11, 2
      // Predicated region
      $region57: #{effnet_ori_forward.2} parent=55 // pred_check
        %p1079 = pneg %p164
      $region58: #{effnet_ori_forward.2} parent=55 // pred_check_branch
        %1081 = sbr.rel (%p1079) target = $region60
      $region59: #{effnet_ori_forward.2} parent=55 // pred_region
        %p1082 = scmp.lt.s32.totalorder %s22, 1
        %s1083 = scalar_select %p1082, %s22, 1
        %s1084 = smul.addr %s1083, 16
        %s1085 = smul.addr %s1084, 8
        %s1086 = scalar_lea.vmem %s5, %s1085
      $region60: #{effnet_ori_forward.2} parent=55 // pred_fallthru
        _
    $region56: #{effnet_ori_forward.2} parent=5 // pred_fallthru
      _
  $region6: #{effnet_ori_forward.2} parent=0 // loop_footer
    %s15 = sadd.s32 1, %s11
  $region7: #{effnet_ori_forward.2} parent=0 // loop_footer_branch
    %10 = sbr.rel target = $region3
  $region8: #{effnet_ori_forward.2} parent=0 // loop_exit
    _

// kernel: effnet_ori_forward.3
$region0: #{effnet_ori_forward.3}
  #allocation0 [shape = 'u32[]', space=smem, size = 0x4, offset = 0x4, fixed_abs, tag = 'smem constant byte address 0x4 - core index']
  #allocation1 [shape = 'u32[144,128]{1,0:T(1,128)}', space=vmem, size = 0x12000, scoped, tag = 'internal scratch']
  #allocation2 [shape = 'f32[2,128]{1,0:T(2,128)}', space=vmem, size = 0x400, scoped, tag = 'scratch operand']
  #allocation3 [shape = 'f32[2,128]{1,0:T(2,128)}', space=vmem, size = 0x400, scoped, tag = 'scratch operand']
  %s0 = inlined_call_operand.vmem [shape: f32[2,128], index: 0, kind: input, shape index: {}]
  %s1 = inlined_call_operand.vmem [shape: bf16[128,128], index: 1, kind: input, shape index: {}]
  %s2 = inlined_call_operand.vmem [shape: bf16[128,128], index: 2, kind: input, shape index: {}]
  %s3 = inlined_call_operand.vmem [shape: f32[1,128], index: 3, kind: input, shape index: {}]
  %s4 = inlined_call_operand.vmem [shape: bf16[128,128], index: 4, kind: input, shape index: {}]
  %s5 = inlined_call_operand.vmem [shape: bf16[128,128], index: 5, kind: input, shape index: {}]
  %s6 = inlined_call_operand.vmem [shape: f32[1,128], index: 6, kind: input, shape index: {}]
  %s7 = inlined_call_operand.vmem [shape: bf16[128,128], index: 7, kind: input, shape index: {}]
  %s8 = inlined_call_operand.vmem [shape: f32[1,128], index: 8, kind: input, shape index: {}]
  %s9 = inlined_call_operand.hbm [shape: f32[2,128], index: 9, kind: output, shape index: {}]
  %s10 = sld [smem:[#allocation0]]
  $region46: #{effnet_ori_forward.3} parent=0
    _
  %s12 = ssub.s32 1, %s10
  %s13 = scalar_select 0, %s12, %s10
  $region1: #{effnet_ori_forward.3} parent=0
    #allocation4 [shape = 'u8[1024]{0}', space=vmem, size = 0x400, scoped, tag = 'output window, operand 0, single buffered']
    #allocation5 [shape = 's32[1]{0}', space=sflag, size = 0x4, scoped, tag = 'scoped memory for effnet_ori_forward.3']
    %14 = vsyncpa [#allocation5], 0
    // Predicated region
    $region2: #{effnet_ori_forward.3} parent=1 // pred_check
      _
    $region3: #{effnet_ori_forward.3} parent=1 // pred_check_branch
      %16 = sbr.rel (0) target = $region5
    $region4: #{effnet_ori_forward.3} parent=1 // pred_region
      _
    $region5: #{effnet_ori_forward.3} parent=1 // pred_fallthru
      _
    // Predicated region
    $region6: #{effnet_ori_forward.3} parent=1 // pred_check
      _
    $region7: #{effnet_ori_forward.3} parent=1 // pred_check_branch
      %18 = sbr.rel (0) target = $region9
    $region8: #{effnet_ori_forward.3} parent=1 // pred_region
      _
    $region9: #{effnet_ori_forward.3} parent=1 // pred_fallthru
      _
    // Predicated region
    $region10: #{effnet_ori_forward.3} parent=1 // pred_check
      _
    $region11: #{effnet_ori_forward.3} parent=1 // pred_check_branch
      %20 = sbr.rel (0) target = $region13
    $region12: #{effnet_ori_forward.3} parent=1 // pred_region
      _
    $region13: #{effnet_ori_forward.3} parent=1 // pred_fallthru
      _
    // Predicated region
    $region14: #{effnet_ori_forward.3} parent=1 // pred_check
      _
    $region15: #{effnet_ori_forward.3} parent=1 // pred_check_branch
      %22 = sbr.rel (0) target = $region17
    $region16: #{effnet_ori_forward.3} parent=1 // pred_region
      _
    $region17: #{effnet_ori_forward.3} parent=1 // pred_fallthru
      _
    // Predicated region
    $region18: #{effnet_ori_forward.3} parent=1 // pred_check
      _
    $region19: #{effnet_ori_forward.3} parent=1 // pred_check_branch
      %24 = sbr.rel (0) target = $region21
    $region20: #{effnet_ori_forward.3} parent=1 // pred_region
      _
    $region21: #{effnet_ori_forward.3} parent=1 // pred_fallthru
      _
    // Predicated region
    $region22: #{effnet_ori_forward.3} parent=1 // pred_check
      _
    $region23: #{effnet_ori_forward.3} parent=1 // pred_check_branch
      %26 = sbr.rel (0) target = $region25
    $region24: #{effnet_ori_forward.3} parent=1 // pred_region
      _
    $region25: #{effnet_ori_forward.3} parent=1 // pred_fallthru
      _
    // Predicated region
    $region26: #{effnet_ori_forward.3} parent=1 // pred_check
      _
    $region27: #{effnet_ori_forward.3} parent=1 // pred_check_branch
      %28 = sbr.rel (0) target = $region29
    $region28: #{effnet_ori_forward.3} parent=1 // pred_region
      _
    $region29: #{effnet_ori_forward.3} parent=1 // pred_fallthru
      _
    // Predicated region
    $region30: #{effnet_ori_forward.3} parent=1 // pred_check
      _
    $region31: #{effnet_ori_forward.3} parent=1 // pred_check_branch
      %30 = sbr.rel (0) target = $region33
    $region32: #{effnet_ori_forward.3} parent=1 // pred_region
      _
    $region33: #{effnet_ori_forward.3} parent=1 // pred_fallthru
      _
    // Predicated region
    $region34: #{effnet_ori_forward.3} parent=1 // pred_check
      _
    $region35: #{effnet_ori_forward.3} parent=1 // pred_check_branch
      %32 = sbr.rel (0) target = $region37
    $region36: #{effnet_ori_forward.3} parent=1 // pred_region
      _
    $region37: #{effnet_ori_forward.3} parent=1 // pred_fallthru
      _
    %v34 = vld [vmem:[%s0] sm:$0x3]
    %v35 = vpack.c.bf16 %v34, %v34
    %v36 = vld [vmem:[%s1] sm:$0xf]
    %v37 = vld [vmem:[%s1 + $0x4] sm:$0xf]
    %v38 = vld [vmem:[%s1 + $0x8] sm:$0xf]
    %v39 = vld [vmem:[%s1 + $0xc] sm:$0xf]
    %v40 = vld [vmem:[%s1 + $0x10] sm:$0xf]
    %v41 = vld [vmem:[%s1 + $0x14] sm:$0xf]
    %v42 = vld [vmem:[%s1 + $0x18] sm:$0xf]
    %v43 = vld [vmem:[%s1 + $0x1c] sm:$0xf]
    %v44 = vld [vmem:[%s1 + $0x20] sm:$0xf]
    %v45 = vld [vmem:[%s1 + $0x24] sm:$0xf]
    %v46 = vld [vmem:[%s1 + $0x28] sm:$0xf]
    %v47 = vld [vmem:[%s1 + $0x2c] sm:$0xf]
    %v48 = vld [vmem:[%s1 + $0x30] sm:$0xf]
    %v49 = vld [vmem:[%s1 + $0x34] sm:$0xf]
    %v50 = vld [vmem:[%s1 + $0x38] sm:$0xf]
    %v51 = vld [vmem:[%s1 + $0x3c] sm:$0xf]
    %v52 = vld [vmem:[%s3] sm:$0x1]
    %v54 = vlaneseq
    %v55 = vshrl.u32 %v54, 7
    %v56 = vsub.s32 0, %v55
    %v57 = vrot.slane %v52, %v56
    %v75 = vunpack.c.l.b16 %v36
    %v76 = vunpack.c.l.b16 %v37
    %v77 = vunpack.c.l.b16 %v38
    %v78 = vunpack.c.l.b16 %v39
    %v79 = vunpack.c.l.b16 %v40
    %v80 = vunpack.c.l.b16 %v41
    %v81 = vunpack.c.l.b16 %v42
    %v82 = vunpack.c.l.b16 %v43
    %v83 = vunpack.c.l.b16 %v44
    %v84 = vunpack.c.l.b16 %v45
    %v85 = vunpack.c.l.b16 %v46
    %v86 = vunpack.c.l.b16 %v47
    %v87 = vunpack.c.l.b16 %v48
    %v88 = vunpack.c.l.b16 %v49
    %v89 = vunpack.c.l.b16 %v50
    %v90 = vunpack.c.l.b16 %v51
    %v91 = vpack.c.b16 %v76, %v75
    %v92 = vpack.c.b16 %v78, %v77
    %v93 = vpack.c.b16 %v80, %v79
    %v94 = vpack.c.b16 %v82, %v81
    %v95 = vpack.c.b16 %v84, %v83
    %v96 = vpack.c.b16 %v86, %v85
    %v97 = vpack.c.b16 %v88, %v87
    %v98 = vpack.c.b16 %v90, %v89
    %107 = vmatprep.subr.bf16.mxu0 0
    %108 = vmatpush1.bf16.msra.mxu0 %v98
    %109 = vmatprep.subr.bf16.mxu0 0
    %110 = vmatpush1.bf16.msra.mxu0 %v97
    %111 = vmatprep.subr.bf16.mxu0 0
    %112 = vmatpush1.bf16.msra.mxu0 %v96
    %113 = vmatprep.subr.bf16.mxu0 0
    %114 = vmatpush1.bf16.msra.mxu0 %v95
    %115 = vmatprep.subr.bf16.mxu0 0
    %116 = vmatpush1.bf16.msra.mxu0 %v94
    %117 = vmatprep.subr.bf16.mxu0 0
    %118 = vmatpush1.bf16.msra.mxu0 %v93
    %119 = vmatprep.subr.bf16.mxu0 0
    %120 = vmatpush1.bf16.msra.mxu0 %v92
    %121 = vmatprep.subr.bf16.mxu0 0
    %122 = vmatpush1.bf16.msra.mxu0 %v91
    %123 = vmatprep.subr.bf16.mxu0 0
    %124 = vmatpush2.bf16.msra.mxu0 0
    %125 = vmatprep.subr.bf16.mxu0 0
    %126 = vmatpush2.bf16.msra.mxu0 0
    %127 = vmatprep.subr.bf16.mxu0 0
    %128 = vmatpush2.bf16.msra.mxu0 0
    %129 = vmatprep.subr.bf16.mxu0 0
    %130 = vmatpush2.bf16.msra.mxu0 0
    %131 = vmatprep.subr.bf16.mxu0 0
    %132 = vmatpush2.bf16.msra.mxu0 0
    %133 = vmatprep.subr.bf16.mxu0 0
    %134 = vmatpush2.bf16.msra.mxu0 0
    %135 = vmatprep.subr.bf16.mxu0 0
    %136 = vmatpush2.bf16.msra.mxu0 0
    %137 = vmatprep.subr.bf16.mxu0 0
    %138 = vmatpush2.bf16.msra.mxu0 0
    %139 = vmatprep.mubr.bf16.mxu0 0
    %140 = vmatmul.mubr.bf16.gmra.mxu0 %v35
    %v141 = vpop.f32.mrf.mxu0
    %v142 = vadd.f32 %v57, %v141
    %v143 = vpop.f32.mrf.mxu0
    %v144 = vpop.f32.mrf.mxu0
    %v145 = vpop.f32.mrf.mxu0
    %146 = vdwg.mxu0
    %147 = vst [vmem:[#allocation2] sm:$0x3] %v142
    %v148 = vld [vmem:[%s2] sm:$0xf]
    %v149 = vld [vmem:[%s2 + $0x4] sm:$0xf]
    %v150 = vld [vmem:[%s2 + $0x8] sm:$0xf]
    %v151 = vld [vmem:[%s2 + $0xc] sm:$0xf]
    %v152 = vld [vmem:[%s2 + $0x10] sm:$0xf]
    %v153 = vld [vmem:[%s2 + $0x14] sm:$0xf]
    %v154 = vld [vmem:[%s2 + $0x18] sm:$0xf]
    %v155 = vld [vmem:[%s2 + $0x1c] sm:$0xf]
    %v156 = vld [vmem:[%s2 + $0x20] sm:$0xf]
    %v157 = vld [vmem:[%s2 + $0x24] sm:$0xf]
    %v158 = vld [vmem:[%s2 + $0x28] sm:$0xf]
    %v159 = vld [vmem:[%s2 + $0x2c] sm:$0xf]
    %v160 = vld [vmem:[%s2 + $0x30] sm:$0xf]
    %v161 = vld [vmem:[%s2 + $0x34] sm:$0xf]
    %v162 = vld [vmem:[%s2 + $0x38] sm:$0xf]
    %v163 = vld [vmem:[%s2 + $0x3c] sm:$0xf]
    %v164 = vld [vmem:[#allocation2] sm:$0x1]
    %v181 = vunpack.c.l.b16 %v148
    %v182 = vunpack.c.l.b16 %v149
    %v183 = vunpack.c.l.b16 %v150
    %v184 = vunpack.c.l.b16 %v151
    %v185 = vunpack.c.l.b16 %v152
    %v186 = vunpack.c.l.b16 %v153
    %v187 = vunpack.c.l.b16 %v154
    %v188 = vunpack.c.l.b16 %v155
    %v189 = vunpack.c.l.b16 %v156
    %v190 = vunpack.c.l.b16 %v157
    %v191 = vunpack.c.l.b16 %v158
    %v192 = vunpack.c.l.b16 %v159
    %v193 = vunpack.c.l.b16 %v160
    %v194 = vunpack.c.l.b16 %v161
    %v195 = vunpack.c.l.b16 %v162
    %v196 = vunpack.c.l.b16 %v163
    %v197 = vpack.c.b16 %v182, %v181
    %v198 = vpack.c.b16 %v184, %v183
    %v199 = vpack.c.b16 %v186, %v185
    %v200 = vpack.c.b16 %v188, %v187
    %v201 = vpack.c.b16 %v190, %v189
    %v202 = vpack.c.b16 %v192, %v191
    %v203 = vpack.c.b16 %v194, %v193
    %v204 = vpack.c.b16 %v196, %v195
    %213 = vmatprep.subr.bf16.mxu0 0
    %214 = vmatpush1.bf16.msra.mxu0 %v204
    %215 = vmatprep.subr.bf16.mxu0 0
    %216 = vmatpush1.bf16.msra.mxu0 %v203
    %217 = vmatprep.subr.bf16.mxu0 0
    %218 = vmatpush1.bf16.msra.mxu0 %v202
    %219 = vmatprep.subr.bf16.mxu0 0
    %220 = vmatpush1.bf16.msra.mxu0 %v201
    %221 = vmatprep.subr.bf16.mxu0 0
    %222 = vmatpush1.bf16.msra.mxu0 %v200
    %223 = vmatprep.subr.bf16.mxu0 0
    %224 = vmatpush1.bf16.msra.mxu0 %v199
    %225 = vmatprep.subr.bf16.mxu0 0
    %226 = vmatpush1.bf16.msra.mxu0 %v198
    %227 = vmatprep.subr.bf16.mxu0 0
    %228 = vmatpush1.bf16.msra.mxu0 %v197
    %229 = vmatprep.subr.bf16.mxu0 0
    %230 = vmatpush2.bf16.msra.mxu0 0
    %231 = vmatprep.subr.bf16.mxu0 0
    %232 = vmatpush2.bf16.msra.mxu0 0
    %233 = vmatprep.subr.bf16.mxu0 0
    %234 = vmatpush2.bf16.msra.mxu0 0
    %235 = vmatprep.subr.bf16.mxu0 0
    %236 = vmatpush2.bf16.msra.mxu0 0
    %237 = vmatprep.subr.bf16.mxu0 0
    %238 = vmatpush2.bf16.msra.mxu0 0
    %239 = vmatprep.subr.bf16.mxu0 0
    %240 = vmatpush2.bf16.msra.mxu0 0
    %241 = vmatprep.subr.bf16.mxu0 0
    %242 = vmatpush2.bf16.msra.mxu0 0
    %243 = vmatprep.subr.bf16.mxu0 0
    %244 = vmatpush2.bf16.msra.mxu0 0
    %245 = vmatprep.mubr.bf16.mxu0 0
    %246 = vmatmul.mubr.bf16.gmra.mxu0 0
    %v247 = vpop.f32.mrf.mxu0
    %v248 = vadd.f32 0.0, %v247
    %v249 = vpop.f32.mrf.mxu0
    %v250 = vpop.f32.mrf.mxu0
    %v251 = vpop.f32.mrf.mxu0
    %252 = vdwg.mxu0
    %v253 = vadd.f32 %v164, %v248
    %v254 = vtanh.pop %v253
    %255 = vst [vmem:[#allocation2] sm:$0x1] %v254
    %v256 = vpack.c.bf16 %v254, %v254
    %v257 = vld [vmem:[#allocation2 + $0x1] sm:$0x1]
    %258 = vmatprep.subr.bf16.mxu0 0
    %259 = vmatpush1.bf16.msra.mxu0 %v204
    %260 = vmatprep.subr.bf16.mxu0 0
    %261 = vmatpush1.bf16.msra.mxu0 %v203
    %262 = vmatprep.subr.bf16.mxu0 0
    %263 = vmatpush1.bf16.msra.mxu0 %v202
    %264 = vmatprep.subr.bf16.mxu0 0
    %265 = vmatpush1.bf16.msra.mxu0 %v201
    %266 = vmatprep.subr.bf16.mxu0 0
    %267 = vmatpush1.bf16.msra.mxu0 %v200
    %268 = vmatprep.subr.bf16.mxu0 0
    %269 = vmatpush1.bf16.msra.mxu0 %v199
    %270 = vmatprep.subr.bf16.mxu0 0
    %271 = vmatpush1.bf16.msra.mxu0 %v198
    %272 = vmatprep.subr.bf16.mxu0 0
    %273 = vmatpush1.bf16.msra.mxu0 %v197
    %274 = vmatprep.subr.bf16.mxu0 0
    %275 = vmatpush2.bf16.msra.mxu0 0
    %276 = vmatprep.subr.bf16.mxu0 0
    %277 = vmatpush2.bf16.msra.mxu0 0
    %278 = vmatprep.subr.bf16.mxu0 0
    %279 = vmatpush2.bf16.msra.mxu0 0
    %280 = vmatprep.subr.bf16.mxu0 0
    %281 = vmatpush2.bf16.msra.mxu0 0
    %282 = vmatprep.subr.bf16.mxu0 0
    %283 = vmatpush2.bf16.msra.mxu0 0
    %284 = vmatprep.subr.bf16.mxu0 0
    %285 = vmatpush2.bf16.msra.mxu0 0
    %286 = vmatprep.subr.bf16.mxu0 0
    %287 = vmatpush2.bf16.msra.mxu0 0
    %288 = vmatprep.subr.bf16.mxu0 0
    %289 = vmatpush2.bf16.msra.mxu0 0
    %290 = vmatprep.mubr.bf16.mxu0 0
    %291 = vmatmul.mubr.bf16.gmra.mxu0 %v256
    %v292 = vpop.f32.mrf.mxu0
    %v293 = vadd.f32 0.0, %v292
    %v294 = vpop.f32.mrf.mxu0
    %v295 = vpop.f32.mrf.mxu0
    %v296 = vpop.f32.mrf.mxu0
    %297 = vdwg.mxu0
    %v298 = vadd.f32 %v257, %v293
    %v299 = vtanh.pop %v298
    %300 = vst [vmem:[#allocation2 + $0x1] sm:$0x1] %v299
    %v301 = vld [vmem:[#allocation2] sm:$0x3]
    %v302 = vpack.c.bf16 %v301, %v301
    %v303 = vld [vmem:[%s4] sm:$0xf]
    %v304 = vld [vmem:[%s4 + $0x4] sm:$0xf]
    %v305 = vld [vmem:[%s4 + $0x8] sm:$0xf]
    %v306 = vld [vmem:[%s4 + $0xc] sm:$0xf]
    %v307 = vld [vmem:[%s4 + $0x10] sm:$0xf]
    %v308 = vld [vmem:[%s4 + $0x14] sm:$0xf]
    %v309 = vld [vmem:[%s4 + $0x18] sm:$0xf]
    %v310 = vld [vmem:[%s4 + $0x1c] sm:$0xf]
    %v311 = vld [vmem:[%s4 + $0x20] sm:$0xf]
    %v312 = vld [vmem:[%s4 + $0x24] sm:$0xf]
    %v313 = vld [vmem:[%s4 + $0x28] sm:$0xf]
    %v314 = vld [vmem:[%s4 + $0x2c] sm:$0xf]
    %v315 = vld [vmem:[%s4 + $0x30] sm:$0xf]
    %v316 = vld [vmem:[%s4 + $0x34] sm:$0xf]
    %v317 = vld [vmem:[%s4 + $0x38] sm:$0xf]
    %v318 = vld [vmem:[%s4 + $0x3c] sm:$0xf]
    %v319 = vld [vmem:[%s6] sm:$0x1]
    %v321 = vlaneseq
    %v322 = vshrl.u32 %v321, 7
    %v323 = vsub.s32 0, %v322
    %v324 = vrot.slane %v319, %v323
    %v342 = vunpack.c.l.b16 %v303
    %v343 = vunpack.c.l.b16 %v304
    %v344 = vunpack.c.l.b16 %v305
    %v345 = vunpack.c.l.b16 %v306
    %v346 = vunpack.c.l.b16 %v307
    %v347 = vunpack.c.l.b16 %v308
    %v348 = vunpack.c.l.b16 %v309
    %v349 = vunpack.c.l.b16 %v310
    %v350 = vunpack.c.l.b16 %v311
    %v351 = vunpack.c.l.b16 %v312
    %v352 = vunpack.c.l.b16 %v313
    %v353 = vunpack.c.l.b16 %v314
    %v354 = vunpack.c.l.b16 %v315
    %v355 = vunpack.c.l.b16 %v316
    %v356 = vunpack.c.l.b16 %v317
    %v357 = vunpack.c.l.b16 %v318
    %v358 = vpack.c.b16 %v343, %v342
    %v359 = vpack.c.b16 %v345, %v344
    %v360 = vpack.c.b16 %v347, %v346
    %v361 = vpack.c.b16 %v349, %v348
    %v362 = vpack.c.b16 %v351, %v350
    %v363 = vpack.c.b16 %v353, %v352
    %v364 = vpack.c.b16 %v355, %v354
    %v365 = vpack.c.b16 %v357, %v356
    %374 = vmatprep.subr.bf16.mxu0 0
    %375 = vmatpush1.bf16.msra.mxu0 %v365
    %376 = vmatprep.subr.bf16.mxu0 0
    %377 = vmatpush1.bf16.msra.mxu0 %v364
    %378 = vmatprep.subr.bf16.mxu0 0
    %379 = vmatpush1.bf16.msra.mxu0 %v363
    %380 = vmatprep.subr.bf16.mxu0 0
    %381 = vmatpush1.bf16.msra.mxu0 %v362
    %382 = vmatprep.subr.bf16.mxu0 0
    %383 = vmatpush1.bf16.msra.mxu0 %v361
    %384 = vmatprep.subr.bf16.mxu0 0
    %385 = vmatpush1.bf16.msra.mxu0 %v360
    %386 = vmatprep.subr.bf16.mxu0 0
    %387 = vmatpush1.bf16.msra.mxu0 %v359
    %388 = vmatprep.subr.bf16.mxu0 0
    %389 = vmatpush1.bf16.msra.mxu0 %v358
    %390 = vmatprep.subr.bf16.mxu0 0
    %391 = vmatpush2.bf16.msra.mxu0 0
    %392 = vmatprep.subr.bf16.mxu0 0
    %393 = vmatpush2.bf16.msra.mxu0 0
    %394 = vmatprep.subr.bf16.mxu0 0
    %395 = vmatpush2.bf16.msra.mxu0 0
    %396 = vmatprep.subr.bf16.mxu0 0
    %397 = vmatpush2.bf16.msra.mxu0 0
    %398 = vmatprep.subr.bf16.mxu0 0
    %399 = vmatpush2.bf16.msra.mxu0 0
    %400 = vmatprep.subr.bf16.mxu0 0
    %401 = vmatpush2.bf16.msra.mxu0 0
    %402 = vmatprep.subr.bf16.mxu0 0
    %403 = vmatpush2.bf16.msra.mxu0 0
    %404 = vmatprep.subr.bf16.mxu0 0
    %405 = vmatpush2.bf16.msra.mxu0 0
    %406 = vmatprep.mubr.bf16.mxu0 0
    %407 = vmatmul.mubr.bf16.gmra.mxu0 %v302
    %v408 = vpop.f32.mrf.mxu0
    %v409 = vadd.f32 %v324, %v408
    %v410 = vpop.f32.mrf.mxu0
    %v411 = vpop.f32.mrf.mxu0
    %v412 = vpop.f32.mrf.mxu0
    %413 = vdwg.mxu0
    %414 = vst [vmem:[#allocation3] sm:$0x3] %v409
    %v415 = vld [vmem:[%s5] sm:$0xf]
    %v416 = vld [vmem:[%s5 + $0x4] sm:$0xf]
    %v417 = vld [vmem:[%s5 + $0x8] sm:$0xf]
    %v418 = vld [vmem:[%s5 + $0xc] sm:$0xf]
    %v419 = vld [vmem:[%s5 + $0x10] sm:$0xf]
    %v420 = vld [vmem:[%s5 + $0x14] sm:$0xf]
    %v421 = vld [vmem:[%s5 + $0x18] sm:$0xf]
    %v422 = vld [vmem:[%s5 + $0x1c] sm:$0xf]
    %v423 = vld [vmem:[%s5 + $0x20] sm:$0xf]
    %v424 = vld [vmem:[%s5 + $0x24] sm:$0xf]
    %v425 = vld [vmem:[%s5 + $0x28] sm:$0xf]
    %v426 = vld [vmem:[%s5 + $0x2c] sm:$0xf]
    %v427 = vld [vmem:[%s5 + $0x30] sm:$0xf]
    %v428 = vld [vmem:[%s5 + $0x34] sm:$0xf]
    %v429 = vld [vmem:[%s5 + $0x38] sm:$0xf]
    %v430 = vld [vmem:[%s5 + $0x3c] sm:$0xf]
    %v431 = vld [vmem:[#allocation3] sm:$0x1]
    %v448 = vunpack.c.l.b16 %v415
    %v449 = vunpack.c.l.b16 %v416
    %v450 = vunpack.c.l.b16 %v417
    %v451 = vunpack.c.l.b16 %v418
    %v452 = vunpack.c.l.b16 %v419
    %v453 = vunpack.c.l.b16 %v420
    %v454 = vunpack.c.l.b16 %v421
    %v455 = vunpack.c.l.b16 %v422
    %v456 = vunpack.c.l.b16 %v423
    %v457 = vunpack.c.l.b16 %v424
    %v458 = vunpack.c.l.b16 %v425
    %v459 = vunpack.c.l.b16 %v426
    %v460 = vunpack.c.l.b16 %v427
    %v461 = vunpack.c.l.b16 %v428
    %v462 = vunpack.c.l.b16 %v429
    %v463 = vunpack.c.l.b16 %v430
    %v464 = vpack.c.b16 %v449, %v448
    %v465 = vpack.c.b16 %v451, %v450
    %v466 = vpack.c.b16 %v453, %v452
    %v467 = vpack.c.b16 %v455, %v454
    %v468 = vpack.c.b16 %v457, %v456
    %v469 = vpack.c.b16 %v459, %v458
    %v470 = vpack.c.b16 %v461, %v460
    %v471 = vpack.c.b16 %v463, %v462
    %480 = vmatprep.subr.bf16.mxu0 0
    %481 = vmatpush1.bf16.msra.mxu0 %v471
    %482 = vmatprep.subr.bf16.mxu0 0
    %483 = vmatpush1.bf16.msra.mxu0 %v470
    %484 = vmatprep.subr.bf16.mxu0 0
    %485 = vmatpush1.bf16.msra.mxu0 %v469
    %486 = vmatprep.subr.bf16.mxu0 0
    %487 = vmatpush1.bf16.msra.mxu0 %v468
    %488 = vmatprep.subr.bf16.mxu0 0
    %489 = vmatpush1.bf16.msra.mxu0 %v467
    %490 = vmatprep.subr.bf16.mxu0 0
    %491 = vmatpush1.bf16.msra.mxu0 %v466
    %492 = vmatprep.subr.bf16.mxu0 0
    %493 = vmatpush1.bf16.msra.mxu0 %v465
    %494 = vmatprep.subr.bf16.mxu0 0
    %495 = vmatpush1.bf16.msra.mxu0 %v464
    %496 = vmatprep.subr.bf16.mxu0 0
    %497 = vmatpush2.bf16.msra.mxu0 0
    %498 = vmatprep.subr.bf16.mxu0 0
    %499 = vmatpush2.bf16.msra.mxu0 0
    %500 = vmatprep.subr.bf16.mxu0 0
    %501 = vmatpush2.bf16.msra.mxu0 0
    %502 = vmatprep.subr.bf16.mxu0 0
    %503 = vmatpush2.bf16.msra.mxu0 0
    %504 = vmatprep.subr.bf16.mxu0 0
    %505 = vmatpush2.bf16.msra.mxu0 0
    %506 = vmatprep.subr.bf16.mxu0 0
    %507 = vmatpush2.bf16.msra.mxu0 0
    %508 = vmatprep.subr.bf16.mxu0 0
    %509 = vmatpush2.bf16.msra.mxu0 0
    %510 = vmatprep.subr.bf16.mxu0 0
    %511 = vmatpush2.bf16.msra.mxu0 0
    %512 = vmatprep.mubr.bf16.mxu0 0
    %513 = vmatmul.mubr.bf16.gmra.mxu0 0
    %v514 = vpop.f32.mrf.mxu0
    %v515 = vadd.f32 0.0, %v514
    %v516 = vpop.f32.mrf.mxu0
    %v517 = vpop.f32.mrf.mxu0
    %v518 = vpop.f32.mrf.mxu0
    %519 = vdwg.mxu0
    %v520 = vadd.f32 %v431, %v515
    %v521 = vtanh.pop %v520
    %522 = vst [vmem:[#allocation3] sm:$0x1] %v521
    %v523 = vpack.c.bf16 %v521, %v521
    %v524 = vld [vmem:[#allocation3 + $0x1] sm:$0x1]
    %525 = vmatprep.subr.bf16.mxu0 0
    %526 = vmatpush1.bf16.msra.mxu0 %v471
    %527 = vmatprep.subr.bf16.mxu0 0
    %528 = vmatpush1.bf16.msra.mxu0 %v470
    %529 = vmatprep.subr.bf16.mxu0 0
    %530 = vmatpush1.bf16.msra.mxu0 %v469
    %531 = vmatprep.subr.bf16.mxu0 0
    %532 = vmatpush1.bf16.msra.mxu0 %v468
    %533 = vmatprep.subr.bf16.mxu0 0
    %534 = vmatpush1.bf16.msra.mxu0 %v467
    %535 = vmatprep.subr.bf16.mxu0 0
    %536 = vmatpush1.bf16.msra.mxu0 %v466
    %537 = vmatprep.subr.bf16.mxu0 0
    %538 = vmatpush1.bf16.msra.mxu0 %v465
    %539 = vmatprep.subr.bf16.mxu0 0
    %540 = vmatpush1.bf16.msra.mxu0 %v464
    %541 = vmatprep.subr.bf16.mxu0 0
    %542 = vmatpush2.bf16.msra.mxu0 0
    %543 = vmatprep.subr.bf16.mxu0 0
    %544 = vmatpush2.bf16.msra.mxu0 0
    %545 = vmatprep.subr.bf16.mxu0 0
    %546 = vmatpush2.bf16.msra.mxu0 0
    %547 = vmatprep.subr.bf16.mxu0 0
    %548 = vmatpush2.bf16.msra.mxu0 0
    %549 = vmatprep.subr.bf16.mxu0 0
    %550 = vmatpush2.bf16.msra.mxu0 0
    %551 = vmatprep.subr.bf16.mxu0 0
    %552 = vmatpush2.bf16.msra.mxu0 0
    %553 = vmatprep.subr.bf16.mxu0 0
    %554 = vmatpush2.bf16.msra.mxu0 0
    %555 = vmatprep.subr.bf16.mxu0 0
    %556 = vmatpush2.bf16.msra.mxu0 0
    %557 = vmatprep.mubr.bf16.mxu0 0
    %558 = vmatmul.mubr.bf16.gmra.mxu0 %v523
    %v559 = vpop.f32.mrf.mxu0
    %v560 = vadd.f32 0.0, %v559
    %v561 = vpop.f32.mrf.mxu0
    %v562 = vpop.f32.mrf.mxu0
    %v563 = vpop.f32.mrf.mxu0
    %564 = vdwg.mxu0
    %v565 = vadd.f32 %v524, %v560
    %v566 = vtanh.pop %v565
    %567 = vst [vmem:[#allocation3 + $0x1] sm:$0x1] %v566
    %v568 = vld [vmem:[#allocation3] sm:$0x3]
    %v569 = vpack.c.bf16 %v568, %v568
    %v570 = vld [vmem:[%s7] sm:$0xf]
    %v571 = vld [vmem:[%s7 + $0x4] sm:$0xf]
    %v572 = vld [vmem:[%s7 + $0x8] sm:$0xf]
    %v573 = vld [vmem:[%s7 + $0xc] sm:$0xf]
    %v574 = vld [vmem:[%s7 + $0x10] sm:$0xf]
    %v575 = vld [vmem:[%s7 + $0x14] sm:$0xf]
    %v576 = vld [vmem:[%s7 + $0x18] sm:$0xf]
    %v577 = vld [vmem:[%s7 + $0x1c] sm:$0xf]
    %v578 = vld [vmem:[%s7 + $0x20] sm:$0xf]
    %v579 = vld [vmem:[%s7 + $0x24] sm:$0xf]
    %v580 = vld [vmem:[%s7 + $0x28] sm:$0xf]
    %v581 = vld [vmem:[%s7 + $0x2c] sm:$0xf]
    %v582 = vld [vmem:[%s7 + $0x30] sm:$0xf]
    %v583 = vld [vmem:[%s7 + $0x34] sm:$0xf]
    %v584 = vld [vmem:[%s7 + $0x38] sm:$0xf]
    %v585 = vld [vmem:[%s7 + $0x3c] sm:$0xf]
    %v586 = vld [vmem:[%s8] sm:$0x1]
    %v588 = vlaneseq
    %v589 = vshrl.u32 %v588, 7
    %v590 = vsub.s32 0, %v589
    %v591 = vrot.slane %v586, %v590
    %v609 = vunpack.c.l.b16 %v570
    %v610 = vunpack.c.l.b16 %v571
    %v611 = vunpack.c.l.b16 %v572
    %v612 = vunpack.c.l.b16 %v573
    %v613 = vunpack.c.l.b16 %v574
    %v614 = vunpack.c.l.b16 %v575
    %v615 = vunpack.c.l.b16 %v576
    %v616 = vunpack.c.l.b16 %v577
    %v617 = vunpack.c.l.b16 %v578
    %v618 = vunpack.c.l.b16 %v579
    %v619 = vunpack.c.l.b16 %v580
    %v620 = vunpack.c.l.b16 %v581
    %v621 = vunpack.c.l.b16 %v582
    %v622 = vunpack.c.l.b16 %v583
    %v623 = vunpack.c.l.b16 %v584
    %v624 = vunpack.c.l.b16 %v585
    %v625 = vpack.c.b16 %v610, %v609
    %v626 = vpack.c.b16 %v612, %v611
    %v627 = vpack.c.b16 %v614, %v613
    %v628 = vpack.c.b16 %v616, %v615
    %v629 = vpack.c.b16 %v618, %v617
    %v630 = vpack.c.b16 %v620, %v619
    %v631 = vpack.c.b16 %v622, %v621
    %v632 = vpack.c.b16 %v624, %v623
    %641 = vmatprep.subr.bf16.mxu0 0
    %642 = vmatpush1.bf16.msra.mxu0 %v632
    %643 = vmatprep.subr.bf16.mxu0 0
    %644 = vmatpush1.bf16.msra.mxu0 %v631
    %645 = vmatprep.subr.bf16.mxu0 0
    %646 = vmatpush1.bf16.msra.mxu0 %v630
    %647 = vmatprep.subr.bf16.mxu0 0
    %648 = vmatpush1.bf16.msra.mxu0 %v629
    %649 = vmatprep.subr.bf16.mxu0 0
    %650 = vmatpush1.bf16.msra.mxu0 %v628
    %651 = vmatprep.subr.bf16.mxu0 0
    %652 = vmatpush1.bf16.msra.mxu0 %v627
    %653 = vmatprep.subr.bf16.mxu0 0
    %654 = vmatpush1.bf16.msra.mxu0 %v626
    %655 = vmatprep.subr.bf16.mxu0 0
    %656 = vmatpush1.bf16.msra.mxu0 %v625
    %657 = vmatprep.subr.bf16.mxu0 0
    %658 = vmatpush2.bf16.msra.mxu0 0
    %659 = vmatprep.subr.bf16.mxu0 0
    %660 = vmatpush2.bf16.msra.mxu0 0
    %661 = vmatprep.subr.bf16.mxu0 0
    %662 = vmatpush2.bf16.msra.mxu0 0
    %663 = vmatprep.subr.bf16.mxu0 0
    %664 = vmatpush2.bf16.msra.mxu0 0
    %665 = vmatprep.subr.bf16.mxu0 0
    %666 = vmatpush2.bf16.msra.mxu0 0
    %667 = vmatprep.subr.bf16.mxu0 0
    %668 = vmatpush2.bf16.msra.mxu0 0
    %669 = vmatprep.subr.bf16.mxu0 0
    %670 = vmatpush2.bf16.msra.mxu0 0
    %671 = vmatprep.subr.bf16.mxu0 0
    %672 = vmatpush2.bf16.msra.mxu0 0
    %673 = vmatprep.mubr.bf16.mxu0 0
    %674 = vmatmul.mubr.bf16.gmra.mxu0 %v569
    %v675 = vpop.f32.mrf.mxu0
    %v676 = vadd.f32 %v591, %v675
    %v677 = vpop.f32.mrf.mxu0
    %v678 = vpop.f32.mrf.mxu0
    %v679 = vpop.f32.mrf.mxu0
    %680 = vdwg.mxu0
    %681 = vst [vmem:[#allocation4] sm:$0x3] %v676
    // Predicated region
    $region38: #{effnet_ori_forward.3} parent=1 // pred_check
      _
    $region39: #{effnet_ori_forward.3} parent=1 // pred_check_branch
      %683 = sbr.rel (0) target = $region41
    $region40: #{effnet_ori_forward.3} parent=1 // pred_region
      %s685 = ssub.s32 32, 32
      %686 = vsyncadd [#allocation5], %s685
      %s688 = sshll.u32 [#allocation4], 4
      %s689 = int_to_ptr.vmem [resolvable:$true] %s688
      %691 = dma.vmem_to_hbm [thread:$0]  %s689, 32, %s9, [#allocation5]
    $region41: #{effnet_ori_forward.3} parent=1 // pred_fallthru
      _
    // Predicated region
    $region42: #{effnet_ori_forward.3} parent=1 // pred_check
      _
    $region43: #{effnet_ori_forward.3} parent=1 // pred_check_branch
      %693 = sbr.rel (0) target = $region45
    $region44: #{effnet_ori_forward.3} parent=1 // pred_region
      %694 = dma.done [#allocation5], 32
    $region45: #{effnet_ori_forward.3} parent=1 // pred_fallthru
      _
    %695 = vsyncpa [#allocation5], 1

</llo_original>
